<compile_context>
chip_gen: v7x
topology: tpu7x:2x2x1
jax: 0.10.0
libtpu: 0.0.40
codegen_flags: <defaults>
</compile_context>

<pallas_src>
import functools
import math

import jax
import jax.numpy as jnp
from jax import lax
from jax.experimental import pallas as pl
from jax.experimental.pallas import tpu as pltpu


def _convlstm_cell_kernel(xh_ref, c_ref, w_ref, b_ref, peep_ref,
                          h_out_ref, c_out_ref, stack_ref,
                          *, kH, kW, S, L, C_pad, NB, activation):
    """Fused ConvLSTM cell for NB batch elements (one grid step).

    xh_ref   : (NB, C_pad, P)  padded+flattened cat([X, H_prev]) (row stride S)
    c_ref    : (NB, C_hid, L)  previous cell state, flat (H, S) layout, data at cols [0, W)
    w_ref    : (C4, K_pad)     all kH*kW conv taps merged along the contraction axis
    b_ref    : (C4, 1)         conv bias
    peep_ref : (3, C_hid, L)   packed peephole weights [W_ci, W_cf, W_co]
    h_out_ref, c_out_ref : (NB, C_hid, L)
    stack_ref: (K_pad, L)      VMEM scratch holding the kH*kW shifted views
    """
    C4 = w_ref.shape[0]
    C_hid = C4 // 4

    if activation == "tanh":
        act = jnp.tanh
    else:  # "relu"
        act = lambda v: jnp.maximum(v, 0.0)

    bias = b_ref[...]                      # (C4, 1): broadcasts over lanes
    wci = peep_ref[0]                      # (C_hid, L)  (hoisted out of the NB loop)
    wcf = peep_ref[1]
    wco = peep_ref[2]

    for i in range(NB):                    # static unroll; NB is small
        # --- gate convolution as ONE big-K matmul ---------------------------------
        # Stack the kH*kW shifted views of the padded frame into scratch; each tap
        # block sits at a sublane-aligned offset t*C_pad.
        for dh in range(kH):
            for dw in range(kW):
                t = dh * kW + dw
                off = dh * S + dw                              # static lane offset
                stack_ref[t * C_pad:(t + 1) * C_pad, :] = xh_ref[i, :, off:off + L]
        acc = jnp.dot(w_ref[...], stack_ref[...],
                      preferred_element_type=jnp.float32) + bias   # (C4, L), f32

        # --- LSTM gate math (torch.chunk order: i, f, C, o), fused in f32 ----------
        i_conv = acc[0 * C_hid:1 * C_hid]
        f_conv = acc[1 * C_hid:2 * C_hid]
        g_conv = acc[2 * C_hid:3 * C_hid]
        o_conv = acc[3 * C_hid:4 * C_hid]

        c_prev = c_ref[i].astype(jnp.float32)
        i_gate = jax.nn.sigmoid(i_conv + wci * c_prev)
        f_gate = jax.nn.sigmoid(f_conv + wcf * c_prev)
        c_new = f_gate * c_prev + i_gate * act(g_conv)
        o_gate = jax.nn.sigmoid(o_conv + wco * c_new)
        h_new = o_gate * act(c_new)

        h_out_ref[i] = h_new.astype(h_out_ref.dtype)
        c_out_ref[i] = c_new.astype(c_out_ref.dtype)


def _pick_batch_block(N):
    """Frames per grid step: amortize per-step overhead while keeping the grid
    length >= 2 when possible (so both v7x TensorCores get work)."""
    if N <= 1:
        return 1
    target = min(8, N // 2)
    for nb in range(target, 0, -1):
        if N % nb == 0:
            return nb
    return 1


def convlstm_cell_forward(X, H_prev, C_prev, conv_w, conv_b, W_ci, W_cf, W_co,
                          *, padding, activation="tanh",
                          compute_dtype=jnp.float32):
    """ConvLSTMCell.forward.

    X:      (N, C_in, H, W)     H_prev, C_prev: (N, C_hid, H, W)
    conv_w: (4*C_hid, C_in + C_hid, kH, kW)   conv_b: (4*C_hid,)
    W_ci, W_cf, W_co: (C_hid, H, W)
    returns (H_new, C_new) each (N, C_hid, H, W)
    """
    N, C_in, H, W = X.shape
    C_hid = H_prev.shape[1]
    C4, C_tot, kH, kW = conv_w.shape
    assert C4 == 4 * C_hid and C_tot == C_in + C_hid

    if isinstance(padding, (list, tuple)):
        pv, ph = int(padding[0]), int(padding[1])
    else:
        pv = ph = int(padding)
    # Module semantics require a "same" convolution (gate maps must match frame_size).
    assert 2 * pv == kH - 1 and 2 * ph == kW - 1, "ConvLSTMCell requires 'same' padding"

    # Flat-image row stride S >= W + 2*ph; round up so L = H*S is a multiple of 128
    # (lane-dense, unmasked stores) when that is cheap.  If L % 128 != 0, stores
    # degrade to masked vst (perf only, not correctness).
    S = W + 2 * ph
    m = 128 // math.gcd(H, 128)
    S_round = -(-S // m) * m
    if S_round <= 2 * S:
        S = S_round
    L = H * S                                  # lane extent of the gate/output tiles
    Hp = H + 2 * pv
    P = Hp * S + (kW - 1)                      # max flat index touched by the taps
    P = -(-P // 128) * 128                     # lane-align the padded input length

    # Sublane-align each conv tap block along the stacked contraction axis.
    C_pad = -(-C_tot // 8) * 8
    K_pad = kH * kW * C_pad

    NB = _pick_batch_block(N)
    grid = (N // NB,)

    # cat([X, H_prev], dim=1), pad channels to C_pad, embed into the zero-padded
    # (Hp, S) frame at rows [pv, pv+H), cols [ph, ph+W), flatten, tail-pad to P.
    # One fused pad/copy in XLA; NCHW stays native (no transpose anywhere).
    xh = jnp.concatenate([X, H_prev], axis=1)
    xh = jnp.pad(xh, ((0, 0), (0, C_pad - C_tot), (pv, pv), (ph, S - W - ph)))
    xh = xh.reshape(N, C_pad, Hp * S)
    xh = jnp.pad(xh, ((0, 0), (0, 0), (0, P - Hp * S))).astype(compute_dtype)

    def flat_state(t):
        # (..., H, W) -> (..., L): data at cols [0, W) of each stride-S row
        # (matches the flat layout of the conv output / cell state).
        lead = t.shape[:-2]
        t = jnp.pad(t, [(0, 0)] * len(lead) + [(0, 0), (0, S - W)])
        return t.reshape(*lead, L)

    c_flat = flat_state(C_prev)                              # (N, C_hid, L)
    peep = flat_state(jnp.stack([W_ci, W_cf, W_co]))         # (3, C_hid, L)

    # Merge the X/H channel split and all kH*kW taps into one (C4, K_pad) weight.
    w = jnp.transpose(conv_w, (0, 2, 3, 1)).reshape(C4, kH * kW, C_tot)
    w = jnp.pad(w, ((0, 0), (0, 0), (0, C_pad - C_tot))).reshape(C4, K_pad)
    w = w.astype(compute_dtype)
    b2 = conv_b.reshape(C4, 1).astype(jnp.float32)

    kernel = functools.partial(_convlstm_cell_kernel, kH=kH, kW=kW, S=S, L=L,
                               C_pad=C_pad, NB=NB, activation=activation)

    flops = 2 * N * C4 * K_pad * L + 10 * N * C_hid * L
    transcendentals = 5 * N * C_hid * L
    bytes_accessed = (xh.size * xh.dtype.itemsize
                      + c_flat.size * c_flat.dtype.itemsize
                      + w.size * w.dtype.itemsize
                      + b2.size * 4
                      + peep.size * peep.dtype.itemsize
                      + 2 * N * C_hid * L * X.dtype.itemsize)

    h_flat_out, c_flat_out = pl.pallas_call(
        kernel,
        out_shape=(jax.ShapeDtypeStruct((N, C_hid, L), X.dtype),
                   jax.ShapeDtypeStruct((N, C_hid, L), X.dtype)),
        grid_spec=pltpu.PrefetchScalarGridSpec(
            num_scalar_prefetch=0,
            grid=grid,
            in_specs=[
                pl.BlockSpec((NB, C_pad, P), lambda n: (n, 0, 0)),   # xh (X|H concat)
                pl.BlockSpec((NB, C_hid, L), lambda n: (n, 0, 0)),   # C_prev
                pl.BlockSpec((C4, K_pad), lambda n: (0, 0)),         # merged conv weight
                pl.BlockSpec((C4, 1), lambda n: (0, 0)),             # conv bias
                pl.BlockSpec((3, C_hid, L), lambda n: (0, 0, 0)),    # peepholes
            ],
            out_specs=[
                pl.BlockSpec((NB, C_hid, L), lambda n: (n, 0, 0)),
                pl.BlockSpec((NB, C_hid, L), lambda n: (n, 0, 0)),
            ],
            scratch_shapes=[pltpu.VMEM((K_pad, L), compute_dtype)],
        ),
        compiler_params=pltpu.CompilerParams(
            dimension_semantics=("parallel",),
        ),
        cost_estimate=pl.CostEstimate(flops=int(flops),
                                      transcendentals=int(transcendentals),
                                      bytes_accessed=int(bytes_accessed)),
    )(xh, c_flat, w, b2, peep)

    # Flat (H, S) layout -> (H, W): drop the padded columns (cheap wrapper slice).
    H_new = h_flat_out.reshape(N, C_hid, H, S)[..., :W]
    C_new = c_flat_out.reshape(N, C_hid, H, S)[..., :W]
    return H_new, C_new


def convlstm_cell_reference(X, H_prev, C_prev, conv_w, conv_b, W_ci, W_cf, W_co,
                            *, padding, activation="tanh"):
    """Pure-JAX reference matching the PyTorch module."""
    if isinstance(padding, (list, tuple)):
        pv, ph = padding[0], padding[1]
    else:
        pv = ph = padding
    act = jnp.tanh if activation == "tanh" else (lambda v: jnp.maximum(v, 0.0))
    inp = jnp.concatenate([X, H_prev], axis=1)
    conv = lax.conv_general_dilated(
        inp, conv_w, window_strides=(1, 1), padding=((pv, pv), (ph, ph)),
        dimension_numbers=("NCHW", "OIHW", "NCHW"),
        precision=lax.Precision.HIGHEST)
    conv = conv + conv_b.reshape(1, -1, 1, 1)
    i_c, f_c, g_c, o_c = jnp.split(conv, 4, axis=1)
    i = jax.nn.sigmoid(i_c + W_ci[None] * C_prev)
    f = jax.nn.sigmoid(f_c + W_cf[None] * C_prev)
    C = f * C_prev + i * act(g_c)
    o = jax.nn.sigmoid(o_c + W_co[None] * C)
    return o * act(C), C


def init_convlstm_params(key, in_channels, out_channels, kernel_size, frame_size):
    """Deterministic init mirroring the module: xavier_uniform conv weight & W_c*, zero bias."""
    kH, kW = kernel_size
    H, W = frame_size
    k_w, k_ci, k_co, k_cf = jax.random.split(key, 4)
    c_tot = in_channels + out_channels
    c4 = 4 * out_channels

    fan_in = c_tot * kH * kW
    fan_out = c4 * kH * kW
    bound = (6.0 / (fan_in + fan_out)) ** 0.5
    conv_w = jax.random.uniform(k_w, (c4, c_tot, kH, kW),
                                minval=-bound, maxval=bound, dtype=jnp.float32)
    conv_b = jnp.zeros((c4,), dtype=jnp.float32)

    # xavier_uniform_ on a (C, H, W) tensor (PyTorch fan convention).
    fan_in_p = H * W
    fan_out_p = out_channels * W
    bound_p = (6.0 / (fan_in_p + fan_out_p)) ** 0.5
    def peep(k):
        return jax.random.uniform(k, (out_channels, H, W),
                                  minval=-bound_p, maxval=bound_p, dtype=jnp.float32)
    return conv_w, conv_b, peep(k_ci), peep(k_co), peep(k_cf)


if __name__ == "__main__":
    key = jax.random.PRNGKey(0)

    # Small ConvLSTMCell config: in_channels=4, out_channels(hidden)=32,
    # kernel_size=3, padding=1, activation='tanh', frame_size=(16, 16).
    C_in, C_hid, H, W = 4, 32, 16, 16
    kernel_size = (3, 3)
    padding = 1
    activation = "tanh"

    k_p, key = jax.random.split(key)
    conv_w, conv_b, W_ci, W_co, W_cf = init_convlstm_params(
        k_p, C_in, C_hid, kernel_size, (H, W))

    fwd = jax.jit(functools.partial(convlstm_cell_forward,
                                    padding=padding, activation=activation))

    # Check both the NB=1 path (N=2 -> grid of 2 single-frame steps) and the
    # batched NB>1 path (N=4 -> 2 steps of 2 frames each).
    for N in (2, 4):
        k_x, k_h, k_c, key = jax.random.split(key, 4)
        X = jax.random.normal(k_x, (N, C_in, H, W), dtype=jnp.float32)
        H_prev = jax.random.normal(k_h, (N, C_hid, H, W), dtype=jnp.float32)
        C_prev = jax.random.normal(k_c, (N, C_hid, H, W), dtype=jnp.float32)

        H_new, C_new = fwd(X, H_prev, C_prev, conv_w, conv_b, W_ci, W_cf, W_co)
        H_new, C_new = jax.block_until_ready((H_new, C_new))

        H_ref, C_ref = convlstm_cell_reference(
            X, H_prev, C_prev, conv_w, conv_b, W_ci, W_cf, W_co,
            padding=padding, activation=activation)
        H_ref, C_ref = jax.block_until_ready((H_ref, C_ref))

        assert H_new.shape == (N, C_hid, H, W) and C_new.shape == (N, C_hid, H, W)
        assert jnp.allclose(H_new, H_ref, atol=2e-4, rtol=2e-4)
        assert jnp.allclose(C_new, C_ref, atol=2e-4, rtol=2e-4)

    print("KERNEL_OK")
</pallas_src>

<mosaic_0001>
module attributes {stable_mosaic.version = 11 : i64} {
  func.func @_convlstm_cell_kernel(%arg0: i32, %arg1: memref<1x40x512xf32, #tpu.memory_space<vmem>>, %arg2: memref<1x32x384xf32, #tpu.memory_space<vmem>>, %arg3: memref<128x360xf32, #tpu.memory_space<vmem>>, %arg4: memref<128x1xf32, #tpu.memory_space<vmem>>, %arg5: memref<3x32x384xf32, #tpu.memory_space<vmem>>, %arg6: memref<1x32x384xf32, #tpu.memory_space<vmem>>, %arg7: memref<1x32x384xf32, #tpu.memory_space<vmem>>, %arg8: memref<360x384xf32, #tpu.memory_space<vmem>>) attributes {dimension_semantics = [#tpu.dimension_semantics<parallel>], iteration_bounds = array<i64: 2>, scalar_prefetch = 0 : i64, scratch_operands = 1 : i64, tpu.core_type = #tpu.core_type<tc>, window_params = [{transform_indices = @transform_0, window_bounds = array<i64: 1, 40, 512>}, {transform_indices = @transform_1, window_bounds = array<i64: 1, 32, 384>}, {pipeline_mode = #tpu.pipeline_mode<synchronous>, transform_indices = @transform_2, window_bounds = array<i64: 128, 360>}, {pipeline_mode = #tpu.pipeline_mode<synchronous>, transform_indices = @transform_3, window_bounds = array<i64: 128, 1>}, {pipeline_mode = #tpu.pipeline_mode<synchronous>, transform_indices = @transform_4, window_bounds = array<i64: 3, 32, 384>}, {transform_indices = @transform_5, window_bounds = array<i64: 1, 32, 384>}, {transform_indices = @transform_6, window_bounds = array<i64: 1, 32, 384>}]} {
    %c0 = arith.constant 0 : index
    %c0_0 = arith.constant 0 : index
    %0 = vector.load %arg4[%c0, %c0_0] : memref<128x1xf32, #tpu.memory_space<vmem>>, vector<128x1xf32>
    %c0_1 = arith.constant 0 : index
    %c0_2 = arith.constant 0 : index
    %c0_3 = arith.constant 0 : index
    %1 = vector.load %arg5[%c0_1, %c0_2, %c0_3] : memref<3x32x384xf32, #tpu.memory_space<vmem>>, vector<1x32x384xf32>
    %2 = vector.shape_cast %1 : vector<1x32x384xf32> to vector<32x384xf32>
    %c1 = arith.constant 1 : index
    %c0_4 = arith.constant 0 : index
    %c0_5 = arith.constant 0 : index
    %3 = vector.load %arg5[%c1, %c0_4, %c0_5] : memref<3x32x384xf32, #tpu.memory_space<vmem>>, vector<1x32x384xf32>
    %4 = vector.shape_cast %3 : vector<1x32x384xf32> to vector<32x384xf32>
    %c2 = arith.constant 2 : index
    %c0_6 = arith.constant 0 : index
    %c0_7 = arith.constant 0 : index
    %5 = vector.load %arg5[%c2, %c0_6, %c0_7] : memref<3x32x384xf32, #tpu.memory_space<vmem>>, vector<1x32x384xf32>
    %6 = vector.shape_cast %5 : vector<1x32x384xf32> to vector<32x384xf32>
    %c0_8 = arith.constant 0 : index
    %c0_9 = arith.constant 0 : index
    %c0_10 = arith.constant 0 : index
    %7 = vector.load %arg1[%c0_8, %c0_9, %c0_10] : memref<1x40x512xf32, #tpu.memory_space<vmem>>, vector<1x40x384xf32>
    %8 = vector.shape_cast %7 : vector<1x40x384xf32> to vector<40x384xf32>
    %c0_11 = arith.constant 0 : index
    %c0_12 = arith.constant 0 : index
    %9 = vector.load %arg8[%c0_11, %c0_12] : memref<360x384xf32, #tpu.memory_space<vmem>>, vector<40x384xf32>
    tpu.vector_store %arg8[%c0_11, %c0_12], %8 {strides = array<i32>} : memref<360x384xf32, #tpu.memory_space<vmem>>, vector<40x384xf32>,
    %c0_13 = arith.constant 0 : index
    %c0_14 = arith.constant 0 : index
    %c1_15 = arith.constant 1 : index
    %10 = vector.load %arg1[%c0_13, %c0_14, %c1_15] : memref<1x40x512xf32, #tpu.memory_space<vmem>>, vector<1x40x384xf32>
    %11 = vector.shape_cast %10 : vector<1x40x384xf32> to vector<40x384xf32>
    %c40 = arith.constant 40 : index
    %c0_16 = arith.constant 0 : index
    %12 = vector.load %arg8[%c40, %c0_16] : memref<360x384xf32, #tpu.memory_space<vmem>>, vector<40x384xf32>
    tpu.vector_store %arg8[%c40, %c0_16], %11 {strides = array<i32>} : memref<360x384xf32, #tpu.memory_space<vmem>>, vector<40x384xf32>,
    %c0_17 = arith.constant 0 : index
    %c0_18 = arith.constant 0 : index
    %c2_19 = arith.constant 2 : index
    %13 = vector.load %arg1[%c0_17, %c0_18, %c2_19] : memref<1x40x512xf32, #tpu.memory_space<vmem>>, vector<1x40x384xf32>
    %14 = vector.shape_cast %13 : vector<1x40x384xf32> to vector<40x384xf32>
    %c80 = arith.constant 80 : index
    %c0_20 = arith.constant 0 : index
    %15 = vector.load %arg8[%c80, %c0_20] : memref<360x384xf32, #tpu.memory_space<vmem>>, vector<40x384xf32>
    tpu.vector_store %arg8[%c80, %c0_20], %14 {strides = array<i32>} : memref<360x384xf32, #tpu.memory_space<vmem>>, vector<40x384xf32>,
    %c0_21 = arith.constant 0 : index
    %c0_22 = arith.constant 0 : index
    %c24 = arith.constant 24 : index
    %16 = vector.load %arg1[%c0_21, %c0_22, %c24] : memref<1x40x512xf32, #tpu.memory_space<vmem>>, vector<1x40x384xf32>
    %17 = vector.shape_cast %16 : vector<1x40x384xf32> to vector<40x384xf32>
    %c120 = arith.constant 120 : index
    %c0_23 = arith.constant 0 : index
    %18 = vector.load %arg8[%c120, %c0_23] : memref<360x384xf32, #tpu.memory_space<vmem>>, vector<40x384xf32>
    tpu.vector_store %arg8[%c120, %c0_23], %17 {strides = array<i32>} : memref<360x384xf32, #tpu.memory_space<vmem>>, vector<40x384xf32>,
    %c0_24 = arith.constant 0 : index
    %c0_25 = arith.constant 0 : index
    %c25 = arith.constant 25 : index
    %19 = vector.load %arg1[%c0_24, %c0_25, %c25] : memref<1x40x512xf32, #tpu.memory_space<vmem>>, vector<1x40x384xf32>
    %20 = vector.shape_cast %19 : vector<1x40x384xf32> to vector<40x384xf32>
    %c160 = arith.constant 160 : index
    %c0_26 = arith.constant 0 : index
    %21 = vector.load %arg8[%c160, %c0_26] : memref<360x384xf32, #tpu.memory_space<vmem>>, vector<40x384xf32>
    tpu.vector_store %arg8[%c160, %c0_26], %20 {strides = array<i32>} : memref<360x384xf32, #tpu.memory_space<vmem>>, vector<40x384xf32>,
    %c0_27 = arith.constant 0 : index
    %c0_28 = arith.constant 0 : index
    %c26 = arith.constant 26 : index
    %22 = vector.load %arg1[%c0_27, %c0_28, %c26] : memref<1x40x512xf32, #tpu.memory_space<vmem>>, vector<1x40x384xf32>
    %23 = vector.shape_cast %22 : vector<1x40x384xf32> to vector<40x384xf32>
    %c200 = arith.constant 200 : index
    %c0_29 = arith.constant 0 : index
    %24 = vector.load %arg8[%c200, %c0_29] : memref<360x384xf32, #tpu.memory_space<vmem>>, vector<40x384xf32>
    tpu.vector_store %arg8[%c200, %c0_29], %23 {strides = array<i32>} : memref<360x384xf32, #tpu.memory_space<vmem>>, vector<40x384xf32>,
    %c0_30 = arith.constant 0 : index
    %c0_31 = arith.constant 0 : index
    %c48 = arith.constant 48 : index
    %25 = vector.load %arg1[%c0_30, %c0_31, %c48] : memref<1x40x512xf32, #tpu.memory_space<vmem>>, vector<1x40x384xf32>
    %26 = vector.shape_cast %25 : vector<1x40x384xf32> to vector<40x384xf32>
    %c240 = arith.constant 240 : index
    %c0_32 = arith.constant 0 : index
    %27 = vector.load %arg8[%c240, %c0_32] : memref<360x384xf32, #tpu.memory_space<vmem>>, vector<40x384xf32>
    tpu.vector_store %arg8[%c240, %c0_32], %26 {strides = array<i32>} : memref<360x384xf32, #tpu.memory_space<vmem>>, vector<40x384xf32>,
    %c0_33 = arith.constant 0 : index
    %c0_34 = arith.constant 0 : index
    %c49 = arith.constant 49 : index
    %28 = vector.load %arg1[%c0_33, %c0_34, %c49] : memref<1x40x512xf32, #tpu.memory_space<vmem>>, vector<1x40x384xf32>
    %29 = vector.shape_cast %28 : vector<1x40x384xf32> to vector<40x384xf32>
    %c280 = arith.constant 280 : index
    %c0_35 = arith.constant 0 : index
    %30 = vector.load %arg8[%c280, %c0_35] : memref<360x384xf32, #tpu.memory_space<vmem>>, vector<40x384xf32>
    tpu.vector_store %arg8[%c280, %c0_35], %29 {strides = array<i32>} : memref<360x384xf32, #tpu.memory_space<vmem>>, vector<40x384xf32>,
    %c0_36 = arith.constant 0 : index
    %c0_37 = arith.constant 0 : index
    %c50 = arith.constant 50 : index
    %31 = vector.load %arg1[%c0_36, %c0_37, %c50] : memref<1x40x512xf32, #tpu.memory_space<vmem>>, vector<1x40x384xf32>
    %32 = vector.shape_cast %31 : vector<1x40x384xf32> to vector<40x384xf32>
    %c320 = arith.constant 320 : index
    %c0_38 = arith.constant 0 : index
    %33 = vector.load %arg8[%c320, %c0_38] : memref<360x384xf32, #tpu.memory_space<vmem>>, vector<40x384xf32>
    tpu.vector_store %arg8[%c320, %c0_38], %32 {strides = array<i32>} : memref<360x384xf32, #tpu.memory_space<vmem>>, vector<40x384xf32>,
    %c0_39 = arith.constant 0 : index
    %c0_40 = arith.constant 0 : index
    %34 = vector.load %arg3[%c0_39, %c0_40] : memref<128x360xf32, #tpu.memory_space<vmem>>, vector<128x360xf32>
    %c0_41 = arith.constant 0 : index
    %c0_42 = arith.constant 0 : index
    %35 = vector.load %arg8[%c0_41, %c0_42] : memref<360x384xf32, #tpu.memory_space<vmem>>, vector<360x384xf32>
    %cst = arith.constant dense<0.000000e+00> : vector<128x384xf32>
    %36 = tpu.matmul %34, %35, %cst {dimension_numbers = #tpu.dot_dimension_numbers<[1], [0], [0], [1], [0, 0, 1, 1], [], []>} : vector<128x360xf32>, vector<360x384xf32>, vector<128x384xf32> -> vector<128x384xf32>
    %37 = vector.broadcast %0 : vector<128x1xf32> to vector<128x384xf32>
    %38 = arith.addf %36, %37 : vector<128x384xf32>
    %39 = vector.extract_strided_slice %38 {offsets = [0, 0], sizes = [32, 384], strides = [1, 1]} : vector<128x384xf32> to vector<32x384xf32>
    %40 = vector.extract_strided_slice %38 {offsets = [32, 0], sizes = [32, 384], strides = [1, 1]} : vector<128x384xf32> to vector<32x384xf32>
    %41 = vector.extract_strided_slice %38 {offsets = [64, 0], sizes = [32, 384], strides = [1, 1]} : vector<128x384xf32> to vector<32x384xf32>
    %42 = vector.extract_strided_slice %38 {offsets = [96, 0], sizes = [32, 384], strides = [1, 1]} : vector<128x384xf32> to vector<32x384xf32>
    %c0_43 = arith.constant 0 : index
    %c0_44 = arith.constant 0 : index
    %c0_45 = arith.constant 0 : index
    %43 = vector.load %arg2[%c0_43, %c0_44, %c0_45] : memref<1x32x384xf32, #tpu.memory_space<vmem>>, vector<1x32x384xf32>
    %44 = vector.shape_cast %43 : vector<1x32x384xf32> to vector<32x384xf32>
    %45 = arith.mulf %2, %44 : vector<32x384xf32>
    %46 = arith.addf %39, %45 : vector<32x384xf32>
    %47 = arith.negf %46 : vector<32x384xf32>
    %48 = math.exp %47 : vector<32x384xf32>
    %cst_46 = arith.constant 1.000000e+00 : f32
    %49 = vector.broadcast %cst_46 : f32 to vector<32x384xf32>
    %50 = arith.addf %49, %48 : vector<32x384xf32>
    %51 = arith.divf %49, %50 : vector<32x384xf32>
    %52 = arith.mulf %4, %44 : vector<32x384xf32>
    %53 = arith.addf %40, %52 : vector<32x384xf32>
    %54 = arith.negf %53 : vector<32x384xf32>
    %55 = math.exp %54 : vector<32x384xf32>
    %cst_47 = arith.constant 1.000000e+00 : f32
    %56 = vector.broadcast %cst_47 : f32 to vector<32x384xf32>
    %57 = arith.addf %56, %55 : vector<32x384xf32>
    %58 = arith.divf %56, %57 : vector<32x384xf32>
    %59 = arith.mulf %58, %44 : vector<32x384xf32>
    %60 = math.tanh %41 : vector<32x384xf32>
    %61 = arith.mulf %51, %60 : vector<32x384xf32>
    %62 = arith.addf %59, %61 : vector<32x384xf32>
    %63 = arith.mulf %6, %62 : vector<32x384xf32>
    %64 = arith.addf %42, %63 : vector<32x384xf32>
    %65 = arith.negf %64 : vector<32x384xf32>
    %66 = math.exp %65 : vector<32x384xf32>
    %cst_48 = arith.constant 1.000000e+00 : f32
    %67 = vector.broadcast %cst_48 : f32 to vector<32x384xf32>
    %68 = arith.addf %67, %66 : vector<32x384xf32>
    %69 = arith.divf %67, %68 : vector<32x384xf32>
    %70 = math.tanh %62 : vector<32x384xf32>
    %71 = arith.mulf %69, %70 : vector<32x384xf32>
    %c0_49 = arith.constant 0 : index
    %c0_50 = arith.constant 0 : index
    %c0_51 = arith.constant 0 : index
    %72 = vector.load %arg6[%c0_49, %c0_50, %c0_51] : memref<1x32x384xf32, #tpu.memory_space<vmem>>, vector<1x32x384xf32>
    %73 = vector.shape_cast %72 : vector<1x32x384xf32> to vector<32x384xf32>
    %74 = vector.shape_cast %71 : vector<32x384xf32> to vector<1x32x384xf32>
    tpu.vector_store %arg6[%c0_49, %c0_50, %c0_51], %74 {strides = array<i32>} : memref<1x32x384xf32, #tpu.memory_space<vmem>>, vector<1x32x384xf32>,
    %c0_52 = arith.constant 0 : index
    %c0_53 = arith.constant 0 : index
    %c0_54 = arith.constant 0 : index
    %75 = vector.load %arg7[%c0_52, %c0_53, %c0_54] : memref<1x32x384xf32, #tpu.memory_space<vmem>>, vector<1x32x384xf32>
    %76 = vector.shape_cast %75 : vector<1x32x384xf32> to vector<32x384xf32>
    %77 = vector.shape_cast %62 : vector<32x384xf32> to vector<1x32x384xf32>
    tpu.vector_store %arg7[%c0_52, %c0_53, %c0_54], %77 {strides = array<i32>} : memref<1x32x384xf32, #tpu.memory_space<vmem>>, vector<1x32x384xf32>,
    return
  }
  func.func @transform_0(%arg0: i32) -> (i32, i32, i32) {
    %c0_i32 = arith.constant 0 : i32
    %c0_i32_0 = arith.constant 0 : i32
    %c0_i32_1 = arith.constant 0 : i32
    return %arg0, %c0_i32, %c0_i32_0 : i32, i32, i32
  }
  func.func @transform_1(%arg0: i32) -> (i32, i32, i32) {
    %c0_i32 = arith.constant 0 : i32
    %c0_i32_0 = arith.constant 0 : i32
    %c0_i32_1 = arith.constant 0 : i32
    return %arg0, %c0_i32, %c0_i32_0 : i32, i32, i32
  }
  func.func @transform_2(%arg0: i32) -> (i32, i32) {
    %c0_i32 = arith.constant 0 : i32
    %c0_i32_0 = arith.constant 0 : i32
    %c0_i32_1 = arith.constant 0 : i32
    return %c0_i32, %c0_i32_0 : i32, i32
  }
  func.func @transform_3(%arg0: i32) -> (i32, i32) {
    %c0_i32 = arith.constant 0 : i32
    %c0_i32_0 = arith.constant 0 : i32
    %c0_i32_1 = arith.constant 0 : i32
    return %c0_i32, %c0_i32_0 : i32, i32
  }
  func.func @transform_4(%arg0: i32) -> (i32, i32, i32) {
    %c0_i32 = arith.constant 0 : i32
    %c0_i32_0 = arith.constant 0 : i32
    %c0_i32_1 = arith.constant 0 : i32
    %c0_i32_2 = arith.constant 0 : i32
    return %c0_i32, %c0_i32_0, %c0_i32_1 : i32, i32, i32
  }
  func.func @transform_5(%arg0: i32) -> (i32, i32, i32) {
    %c0_i32 = arith.constant 0 : i32
    %c0_i32_0 = arith.constant 0 : i32
    %c0_i32_1 = arith.constant 0 : i32
    return %arg0, %c0_i32, %c0_i32_0 : i32, i32, i32
  }
  func.func @transform_6(%arg0: i32) -> (i32, i32, i32) {
    %c0_i32 = arith.constant 0 : i32
    %c0_i32_0 = arith.constant 0 : i32
    %c0_i32_1 = arith.constant 0 : i32
    return %arg0, %c0_i32, %c0_i32_0 : i32, i32, i32
  }
}

</mosaic_0001>

<llo_original>
// kernel: convlstm_cell_forward.1
$region0: #{convlstm_cell_forward.1}
  #allocation0 [shape = 'u32[]', space=smem, size = 0x4, offset = 0x4, fixed_abs, tag = 'smem constant byte address 0x4 - core index']
  #allocation1 [shape = 'u32[144,128]{1,0:T(1,128)}', space=vmem, size = 0x12000, scoped, tag = 'internal scratch']
  #allocation2 [shape = 'f32[360,384]{1,0:T(8,128)}', space=vmem, size = 0x87000, scoped, tag = 'scratch operand']
  %s0 = inlined_call_operand.vmem [shape: f32[2,40,512], index: 0, kind: input, shape index: {}]
  %s1 = inlined_call_operand.vmem [shape: f32[2,32,384], index: 1, kind: input, shape index: {}]
  %s2 = inlined_call_operand.vmem [shape: f32[128,360], index: 2, kind: input, shape index: {}]
  %s3 = inlined_call_operand.vmem [shape: f32[128,1], index: 3, kind: input, shape index: {}]
  %s4 = inlined_call_operand.vmem [shape: f32[3,32,384], index: 4, kind: input, shape index: {}]
  %s5 = inlined_call_operand.vmem [shape: f32[2,32,384], index: 5, kind: output, shape index: {0}]
  %s6 = inlined_call_operand.vmem [shape: f32[2,32,384], index: 6, kind: output, shape index: {1}]
  %7 = xla_tuple %s5, %s6
  %s8 = sld [smem:[#allocation0]]
  $region61: #{convlstm_cell_forward.1} parent=0
    _
  %s10 = ssub.s32 1, %s8
  %s11 = scalar_select 0, %s10, %s8
  loop: start=0, step=1, limit=4
  $region2: #{convlstm_cell_forward.1} parent=0 // loop_pre_header
    _
  $region3: #{convlstm_cell_forward.1} parent=0 // loop_header
    %s13 = sphi 0, %s17
    %p14 = scmp.ge.s32.totalorder %s13, 4
    %s23 = sphi 0, %s25
    %s26 = sphi 0, %s23
    %s27 = sphi 0, %s26
    %s43 = sphi 0, %s27
    %s49 = sphi 0, %s51
    %s52 = sphi 0, %s49
    %s53 = sphi 0, %s52
    %s69 = sphi 0, %s53
    %s73 = sphi 0, %s73
    %s75 = sphi 0, %s73
    %s76 = sphi 0, %s75
    %s90 = sphi 0, %s76
    %s94 = sphi 0, %s94
    %s96 = sphi 0, %s94
    %s97 = sphi 0, %s96
    %s111 = sphi 0, %s97
    %s115 = sphi 0, %s115
    %s117 = sphi 0, %s115
    %s118 = sphi 0, %s117
    %s132 = sphi 0, %s118
    %s138 = sphi 0, %s140
    %s141 = sphi 0, %s138
    %s142 = sphi 0, %s141
    %s158 = sphi 0, %s142
    %s164 = sphi 0, %s166
    %s167 = sphi 0, %s164
    %s168 = sphi 0, %s167
    %s184 = sphi 0, %s168
  $region4: #{convlstm_cell_forward.1} parent=0 // loop_header_branch
    %16 = sbr.rel (%p14) target = $region8
  $region5: #{convlstm_cell_forward.1} parent=0 // loop_body
    %s18 = ssub.s32 %s13, 1
    %s19 = ssub.s32 %s13, 2
    %s20 = sadd.s32 %s13, 1
    %s21 = ssub.s32 %s13, %s20
    %p22 = scmp.eq.s32.totalorder %s21, 0
    %s24 = sadd.s32 %s23, 1
    %s25 = scalar_select %p22, %s23, %s24
    %p28 = pneg %p22
    %p29 = scmp.eq.s32.totalorder %s13, 1
    %p30 = por %p28, %p29
    %p31 = scmp.ne.s32.totalorder %s23, %s26
    %p32 = scmp.eq.s32.totalorder %s13, 0
    %p33 = por %p31, %p32
    %p34 = scmp.ne.s32.totalorder %s23, %s26
    %p35 = scmp.eq.s32.totalorder %s18, 1
    %p36 = por %p34, %p35
    %p37 = scmp.ne.s32.totalorder %s26, %s27
    %p38 = scmp.eq.s32.totalorder %s18, 0
    %p39 = por %p37, %p38
    %p40 = scmp.ne.s32.totalorder %s26, %s27
    %p41 = scmp.eq.s32.totalorder %s19, 1
    %p42 = por %p40, %p41
    %p44 = scmp.ne.s32.totalorder %s27, %s43
    %p45 = scmp.eq.s32.totalorder %s19, 0
    %p46 = por %p44, %p45
    %s47 = ssub.s32 %s13, %s20
    %p48 = scmp.eq.s32.totalorder %s47, 0
    %s50 = sadd.s32 %s49, 1
    %s51 = scalar_select %p48, %s49, %s50
    %p54 = pneg %p48
    %p55 = scmp.eq.s32.totalorder %s13, 1
    %p56 = por %p54, %p55
    %p57 = scmp.ne.s32.totalorder %s49, %s52
    %p58 = scmp.eq.s32.totalorder %s13, 0
    %p59 = por %p57, %p58
    %p60 = scmp.ne.s32.totalorder %s49, %s52
    %p61 = scmp.eq.s32.totalorder %s18, 1
    %p62 = por %p60, %p61
    %p63 = scmp.ne.s32.totalorder %s52, %s53
    %p64 = scmp.eq.s32.totalorder %s18, 0
    %p65 = por %p63, %p64
    %p66 = scmp.ne.s32.totalorder %s52, %s53
    %p67 = scmp.eq.s32.totalorder %s19, 1
    %p68 = por %p66, %p67
    %p70 = scmp.ne.s32.totalorder %s53, %s69
    %p71 = scmp.eq.s32.totalorder %s19, 0
    %p72 = por %p70, %p71
    %s74 = sadd.s32 %s73, 1
    %p77 = scmp.eq.s32.totalorder %s13, 1
    %p78 = scmp.ne.s32.totalorder %s73, %s75
    %p79 = scmp.eq.s32.totalorder %s13, 0
    %p80 = por %p78, %p79
    %p81 = scmp.ne.s32.totalorder %s73, %s75
    %p82 = scmp.eq.s32.totalorder %s18, 1
    %p83 = por %p81, %p82
    %p84 = scmp.ne.s32.totalorder %s75, %s76
    %p85 = scmp.eq.s32.totalorder %s18, 0
    %p86 = por %p84, %p85
    %p87 = scmp.ne.s32.totalorder %s75, %s76
    %p88 = scmp.eq.s32.totalorder %s19, 1
    %p89 = por %p87, %p88
    %p91 = scmp.ne.s32.totalorder %s76, %s90
    %p92 = scmp.eq.s32.totalorder %s19, 0
    %p93 = por %p91, %p92
    %s95 = sadd.s32 %s94, 1
    %p98 = scmp.eq.s32.totalorder %s13, 1
    %p99 = scmp.ne.s32.totalorder %s94, %s96
    %p100 = scmp.eq.s32.totalorder %s13, 0
    %p101 = por %p99, %p100
    %p102 = scmp.ne.s32.totalorder %s94, %s96
    %p103 = scmp.eq.s32.totalorder %s18, 1
    %p104 = por %p102, %p103
    %p105 = scmp.ne.s32.totalorder %s96, %s97
    %p106 = scmp.eq.s32.totalorder %s18, 0
    %p107 = por %p105, %p106
    %p108 = scmp.ne.s32.totalorder %s96, %s97
    %p109 = scmp.eq.s32.totalorder %s19, 1
    %p110 = por %p108, %p109
    %p112 = scmp.ne.s32.totalorder %s97, %s111
    %p113 = scmp.eq.s32.totalorder %s19, 0
    %p114 = por %p112, %p113
    %s116 = sadd.s32 %s115, 1
    %p119 = scmp.eq.s32.totalorder %s13, 1
    %p120 = scmp.ne.s32.totalorder %s115, %s117
    %p121 = scmp.eq.s32.totalorder %s13, 0
    %p122 = por %p120, %p121
    %p123 = scmp.ne.s32.totalorder %s115, %s117
    %p124 = scmp.eq.s32.totalorder %s18, 1
    %p125 = por %p123, %p124
    %p126 = scmp.ne.s32.totalorder %s117, %s118
    %p127 = scmp.eq.s32.totalorder %s18, 0
    %p128 = por %p126, %p127
    %p129 = scmp.ne.s32.totalorder %s117, %s118
    %p130 = scmp.eq.s32.totalorder %s19, 1
    %p131 = por %p129, %p130
    %p133 = scmp.ne.s32.totalorder %s118, %s132
    %p134 = scmp.eq.s32.totalorder %s19, 0
    %p135 = por %p133, %p134
    %s136 = ssub.s32 %s13, %s20
    %p137 = scmp.eq.s32.totalorder %s136, 0
    %s139 = sadd.s32 %s138, 1
    %s140 = scalar_select %p137, %s138, %s139
    %p143 = pneg %p137
    %p144 = scmp.eq.s32.totalorder %s13, 1
    %p145 = por %p143, %p144
    %p146 = scmp.ne.s32.totalorder %s138, %s141
    %p147 = scmp.eq.s32.totalorder %s13, 0
    %p148 = por %p146, %p147
    %p149 = scmp.ne.s32.totalorder %s138, %s141
    %p150 = scmp.eq.s32.totalorder %s18, 1
    %p151 = por %p149, %p150
    %p152 = scmp.ne.s32.totalorder %s141, %s142
    %p153 = scmp.eq.s32.totalorder %s18, 0
    %p154 = por %p152, %p153
    %p155 = scmp.ne.s32.totalorder %s141, %s142
    %p156 = scmp.eq.s32.totalorder %s19, 1
    %p157 = por %p155, %p156
    %p159 = scmp.ne.s32.totalorder %s142, %s158
    %p160 = scmp.eq.s32.totalorder %s19, 0
    %p161 = por %p159, %p160
    %s162 = ssub.s32 %s13, %s20
    %p163 = scmp.eq.s32.totalorder %s162, 0
    %s165 = sadd.s32 %s164, 1
    %s166 = scalar_select %p163, %s164, %s165
    %p169 = pneg %p163
    %p170 = scmp.eq.s32.totalorder %s13, 1
    %p171 = por %p169, %p170
    %p172 = scmp.ne.s32.totalorder %s164, %s167
    %p173 = scmp.eq.s32.totalorder %s13, 0
    %p174 = por %p172, %p173
    %p175 = scmp.ne.s32.totalorder %s164, %s167
    %p176 = scmp.eq.s32.totalorder %s18, 1
    %p177 = por %p175, %p176
    %p178 = scmp.ne.s32.totalorder %s167, %s168
    %p179 = scmp.eq.s32.totalorder %s18, 0
    %p180 = por %p178, %p179
    %p181 = scmp.ne.s32.totalorder %s167, %s168
    %p182 = scmp.eq.s32.totalorder %s19, 1
    %p183 = por %p181, %p182
    %p185 = scmp.ne.s32.totalorder %s168, %s184
    %p186 = scmp.eq.s32.totalorder %s19, 0
    %p187 = por %p185, %p186
    %p188 = scmp.le.s32.totalorder 1, %s13
    %p189 = scmp.lt.s32.totalorder %s13, 3
    %p190 = pnand %p188, %p189
    %p191 = pneg %p190
    // Predicated region
    $region9: #{convlstm_cell_forward.1} parent=5 // pred_check
      _
    $region10: #{convlstm_cell_forward.1} parent=5 // pred_check_branch
      %193 = sbr.rel (%p190) target = $region12
    $region11: #{convlstm_cell_forward.1} parent=5 // pred_region
      %s194 = ssub.s32 %s13, 1
      // Predicated region
      $region13: #{convlstm_cell_forward.1} parent=11 // pred_check
        %p195 = pneg %p86
      $region14: #{convlstm_cell_forward.1} parent=11 // pred_check_branch
        %197 = sbr.rel (%p195) target = $region16
      $region15: #{convlstm_cell_forward.1} parent=11 // pred_region
        _
      $region16: #{convlstm_cell_forward.1} parent=11 // pred_fallthru
        _
      // Predicated region
      $region17: #{convlstm_cell_forward.1} parent=11 // pred_check
        %p198 = pneg %p107
      $region18: #{convlstm_cell_forward.1} parent=11 // pred_check_branch
        %200 = sbr.rel (%p198) target = $region20
      $region19: #{convlstm_cell_forward.1} parent=11 // pred_region
        _
      $region20: #{convlstm_cell_forward.1} parent=11 // pred_fallthru
        _
      // Predicated region
      $region21: #{convlstm_cell_forward.1} parent=11 // pred_check
        %p201 = pneg %p128
      $region22: #{convlstm_cell_forward.1} parent=11 // pred_check_branch
        %203 = sbr.rel (%p201) target = $region24
      $region23: #{convlstm_cell_forward.1} parent=11 // pred_region
        _
      $region24: #{convlstm_cell_forward.1} parent=11 // pred_fallthru
        _
    $region12: #{convlstm_cell_forward.1} parent=5 // pred_fallthru
      _
    %p204 = scmp.lt.s32.totalorder %s13, 2
    // Predicated region
    $region25: #{convlstm_cell_forward.1} parent=5 // pred_check
      %p205 = pneg %p204
    $region26: #{convlstm_cell_forward.1} parent=5 // pred_check_branch
      %207 = sbr.rel (%p205) target = $region28
    $region27: #{convlstm_cell_forward.1} parent=5 // pred_region
      // Predicated region
      $region29: #{convlstm_cell_forward.1} parent=27 // pred_check
        %p208 = pneg %p33
      $region30: #{convlstm_cell_forward.1} parent=27 // pred_check_branch
        %210 = sbr.rel (%p208) target = $region32
      $region31: #{convlstm_cell_forward.1} parent=27 // pred_region
        %p211 = scmp.lt.s32.totalorder %s13, 1
        %s212 = scalar_select %p211, %s13, 1
        %s213 = smul.addr %s212, 20
        %s214 = smul.addr %s213, 8
        %s215 = scalar_lea.vmem %s0, %s214
      $region32: #{convlstm_cell_forward.1} parent=27 // pred_fallthru
        _
      // Predicated region
      $region33: #{convlstm_cell_forward.1} parent=27 // pred_check
        %p216 = pneg %p59
      $region34: #{convlstm_cell_forward.1} parent=27 // pred_check_branch
        %218 = sbr.rel (%p216) target = $region36
      $region35: #{convlstm_cell_forward.1} parent=27 // pred_region
        %p219 = scmp.lt.s32.totalorder %s13, 1
        %s220 = scalar_select %p219, %s13, 1
        %s221 = smul.addr %s220, 12
        %s222 = smul.addr %s221, 8
        %s223 = scalar_lea.vmem %s1, %s222
      $region36: #{convlstm_cell_forward.1} parent=27 // pred_fallthru
        _
    $region28: #{convlstm_cell_forward.1} parent=5 // pred_fallthru
      _
    %p224 = scmp.le.s32.totalorder 1, %s13
    %p225 = scmp.lt.s32.totalorder %s13, 3
    %p226 = pnand %p224, %p225
    %p227 = pneg %p226
    // Predicated region
    $region37: #{convlstm_cell_forward.1} parent=5 // pred_check
      _
    $region38: #{convlstm_cell_forward.1} parent=5 // pred_check_branch
      %229 = sbr.rel (%p226) target = $region40
    $region39: #{convlstm_cell_forward.1} parent=5 // pred_region
      %s230 = ssub.s32 %s13, 1
      %p231 = scmp.lt.s32.totalorder %s18, 1
      %s232 = scalar_select %p231, %s18, 1
      %s233 = smul.addr %s232, 20
      %s234 = smul.addr %s233, 8
      %s235 = scalar_lea.vmem %s0, %s234
      %p236 = pneg %p39
      %p237 = pneg %p36
      %p238 = scmp.lt.s32.totalorder %s18, 1
      %s239 = scalar_select %p238, %s18, 1
      %s240 = smul.addr %s239, 12
      %s241 = smul.addr %s240, 8
      %s242 = scalar_lea.vmem %s1, %s241
      %p243 = pneg %p65
      %p244 = pneg %p62
      %p245 = pneg %p86
      %p246 = pneg %p83
      %p247 = pneg %p107
      %p248 = pneg %p104
      %p249 = pneg %p128
      %p250 = pneg %p125
      %p251 = pneg %p154
      %p252 = pneg %p151
      %p253 = scmp.lt.s32.totalorder %s18, 1
      %s254 = scalar_select %p253, %s18, 1
      %s255 = smul.addr %s254, 12
      %s256 = smul.addr %s255, 8
      %s257 = scalar_lea.vmem %s5, %s256
      %p258 = pneg %p180
      %p259 = pneg %p177
      %p260 = scmp.lt.s32.totalorder %s18, 1
      %s261 = scalar_select %p260, %s18, 1
      %s262 = smul.addr %s261, 12
      %s263 = smul.addr %s262, 8
      %s264 = scalar_lea.vmem %s6, %s263
      %p265 = scmp.lt.s32.totalorder %s18, 1
      %s266 = scalar_select %p265, %s18, 1
      %s267 = smul.addr %s266, 20
      %s268 = smul.addr %s267, 8
      %s269 = scalar_lea.vmem %s0, %s268
      %p270 = scmp.lt.s32.totalorder %s18, 1
      %s271 = scalar_select %p270, %s18, 1
      %s272 = smul.addr %s271, 12
      %s273 = smul.addr %s272, 8
      %s274 = scalar_lea.vmem %s1, %s273
      %p275 = scmp.lt.s32.totalorder %s18, 1
      %s276 = scalar_select %p275, %s18, 1
      %s277 = smul.addr %s276, 12
      %s278 = smul.addr %s277, 8
      %s279 = scalar_lea.vmem %s5, %s278
      %p280 = scmp.lt.s32.totalorder %s18, 1
      %s281 = scalar_select %p280, %s18, 1
      %s282 = smul.addr %s281, 12
      %s283 = smul.addr %s282, 8
      %s284 = scalar_lea.vmem %s6, %s283
      %v285 = vld [vmem:[%s3] sm:$0xff]
      %v286 = vld [vmem:[%s3 + $0x8] sm:$0xff]
      %v287 = vld [vmem:[%s3 + $0x10] sm:$0xff]
      %v288 = vld [vmem:[%s3 + $0x18] sm:$0xff]
      %v289 = vld [vmem:[%s3 + $0x20] sm:$0xff]
      %v290 = vld [vmem:[%s3 + $0x28] sm:$0xff]
      %v291 = vld [vmem:[%s3 + $0x30] sm:$0xff]
      %v292 = vld [vmem:[%s3 + $0x38] sm:$0xff]
      %v293 = vld [vmem:[%s3 + $0x40] sm:$0xff]
      %v294 = vld [vmem:[%s3 + $0x48] sm:$0xff]
      %v295 = vld [vmem:[%s3 + $0x50] sm:$0xff]
      %v296 = vld [vmem:[%s3 + $0x58] sm:$0xff]
      %v297 = vld [vmem:[%s3 + $0x60] sm:$0xff]
      %v298 = vld [vmem:[%s3 + $0x68] sm:$0xff]
      %v299 = vld [vmem:[%s3 + $0x70] sm:$0xff]
      %v300 = vld [vmem:[%s3 + $0x78] sm:$0xff]
      %v301 = vld [vmem:[%s4] sm:$0xff]
      %v302 = vld [vmem:[%s4 + $0x8] sm:$0xff]
      %v303 = vld [vmem:[%s4 + $0x10] sm:$0xff]
      %v304 = vld [vmem:[%s4 + $0x18] sm:$0xff]
      %v305 = vld [vmem:[%s4 + $0x20] sm:$0xff]
      %v306 = vld [vmem:[%s4 + $0x28] sm:$0xff]
      %v307 = vld [vmem:[%s4 + $0x30] sm:$0xff]
      %v308 = vld [vmem:[%s4 + $0x38] sm:$0xff]
      %v309 = vld [vmem:[%s4 + $0x40] sm:$0xff]
      %v310 = vld [vmem:[%s4 + $0x48] sm:$0xff]
      %v311 = vld [vmem:[%s4 + $0x50] sm:$0xff]
      %v312 = vld [vmem:[%s4 + $0x58] sm:$0xff]
      %s313 = scalar_lea.vmem %s4, 96
      %v314 = vld [vmem:[%s313] sm:$0xff]
      %v315 = vld [vmem:[%s313 + $0x8] sm:$0xff]
      %v316 = vld [vmem:[%s313 + $0x10] sm:$0xff]
      %v317 = vld [vmem:[%s313 + $0x18] sm:$0xff]
      %v318 = vld [vmem:[%s313 + $0x20] sm:$0xff]
      %v319 = vld [vmem:[%s313 + $0x28] sm:$0xff]
      %v320 = vld [vmem:[%s313 + $0x30] sm:$0xff]
      %v321 = vld [vmem:[%s313 + $0x38] sm:$0xff]
      %v322 = vld [vmem:[%s313 + $0x40] sm:$0xff]
      %v323 = vld [vmem:[%s313 + $0x48] sm:$0xff]
      %v324 = vld [vmem:[%s313 + $0x50] sm:$0xff]
      %v325 = vld [vmem:[%s313 + $0x58] sm:$0xff]
      %s326 = scalar_lea.vmem %s4, 192
      %v327 = vld [vmem:[%s326] sm:$0xff]
      %v328 = vld [vmem:[%s326 + $0x8] sm:$0xff]
      %v329 = vld [vmem:[%s326 + $0x10] sm:$0xff]
      %v330 = vld [vmem:[%s326 + $0x18] sm:$0xff]
      %v331 = vld [vmem:[%s326 + $0x20] sm:$0xff]
      %v332 = vld [vmem:[%s326 + $0x28] sm:$0xff]
      %v333 = vld [vmem:[%s326 + $0x30] sm:$0xff]
      %v334 = vld [vmem:[%s326 + $0x38] sm:$0xff]
      %v335 = vld [vmem:[%s326 + $0x40] sm:$0xff]
      %v336 = vld [vmem:[%s326 + $0x48] sm:$0xff]
      %v337 = vld [vmem:[%s326 + $0x50] sm:$0xff]
      %v338 = vld [vmem:[%s326 + $0x58] sm:$0xff]
      %v339 = vld [vmem:[%s269] sm:$0xff]
      %v340 = vld [vmem:[%s269 + $0x8] sm:$0xff]
      %v341 = vld [vmem:[%s269 + $0x10] sm:$0xff]
      %v342 = vld [vmem:[%s269 + $0x20] sm:$0xff]
      %v343 = vld [vmem:[%s269 + $0x28] sm:$0xff]
      %v344 = vld [vmem:[%s269 + $0x30] sm:$0xff]
      %v345 = vld [vmem:[%s269 + $0x40] sm:$0xff]
      %v346 = vld [vmem:[%s269 + $0x48] sm:$0xff]
      %v347 = vld [vmem:[%s269 + $0x50] sm:$0xff]
      %v348 = vld [vmem:[%s269 + $0x60] sm:$0xff]
      %v349 = vld [vmem:[%s269 + $0x68] sm:$0xff]
      %v350 = vld [vmem:[%s269 + $0x70] sm:$0xff]
      %v351 = vld [vmem:[%s269 + $0x80] sm:$0xff]
      %v352 = vld [vmem:[%s269 + $0x88] sm:$0xff]
      %v353 = vld [vmem:[%s269 + $0x90] sm:$0xff]
      %354 = vst [vmem:[#allocation2] sm:$0xff] %v339
      %355 = vst [vmem:[#allocation2 + $0x8] sm:$0xff] %v340
      %356 = vst [vmem:[#allocation2 + $0x10] sm:$0xff] %v341
      %357 = vst [vmem:[#allocation2 + $0x18] sm:$0xff] %v342
      %358 = vst [vmem:[#allocation2 + $0x20] sm:$0xff] %v343
      %359 = vst [vmem:[#allocation2 + $0x28] sm:$0xff] %v344
      %360 = vst [vmem:[#allocation2 + $0x30] sm:$0xff] %v345
      %361 = vst [vmem:[#allocation2 + $0x38] sm:$0xff] %v346
      %362 = vst [vmem:[#allocation2 + $0x40] sm:$0xff] %v347
      %363 = vst [vmem:[#allocation2 + $0x48] sm:$0xff] %v348
      %364 = vst [vmem:[#allocation2 + $0x50] sm:$0xff] %v349
      %365 = vst [vmem:[#allocation2 + $0x58] sm:$0xff] %v350
      %366 = vst [vmem:[#allocation2 + $0x60] sm:$0xff] %v351
      %367 = vst [vmem:[#allocation2 + $0x68] sm:$0xff] %v352
      %368 = vst [vmem:[#allocation2 + $0x70] sm:$0xff] %v353
      %v369 = vld [vmem:[%s269] sm:$0xff]
      %v370 = vld [vmem:[%s269 + $0x8] sm:$0xff]
      %v371 = vld [vmem:[%s269 + $0x10] sm:$0xff]
      %v372 = vld [vmem:[%s269 + $0x18] sm:$0xff]
      %v373 = vld [vmem:[%s269 + $0x20] sm:$0xff]
      %v374 = vld [vmem:[%s269 + $0x28] sm:$0xff]
      %v375 = vld [vmem:[%s269 + $0x30] sm:$0xff]
      %v376 = vld [vmem:[%s269 + $0x38] sm:$0xff]
      %v377 = vld [vmem:[%s269 + $0x40] sm:$0xff]
      %v378 = vld [vmem:[%s269 + $0x48] sm:$0xff]
      %v379 = vld [vmem:[%s269 + $0x50] sm:$0xff]
      %v380 = vld [vmem:[%s269 + $0x58] sm:$0xff]
      %v381 = vld [vmem:[%s269 + $0x60] sm:$0xff]
      %v382 = vld [vmem:[%s269 + $0x68] sm:$0xff]
      %v383 = vld [vmem:[%s269 + $0x70] sm:$0xff]
      %v384 = vld [vmem:[%s269 + $0x78] sm:$0xff]
      %v385 = vld [vmem:[%s269 + $0x80] sm:$0xff]
      %v386 = vld [vmem:[%s269 + $0x88] sm:$0xff]
      %v387 = vld [vmem:[%s269 + $0x90] sm:$0xff]
      %v388 = vld [vmem:[%s269 + $0x98] sm:$0xff]
      %409 = vrot.lane.b32.xlu0 %v369, 127
      %v410 = vpop.permute.xlu0 %409
      %411 = vrot.lane.b32.xlu0 %v370, 127
      %v412 = vpop.permute.xlu0 %411
      %413 = vrot.lane.b32.xlu0 %v371, 127
      %v414 = vpop.permute.xlu0 %413
      %415 = vrot.lane.b32.xlu0 %v372, 127
      %v416 = vpop.permute.xlu0 %415
      %417 = vrot.lane.b32.xlu0 %v373, 127
      %v418 = vpop.permute.xlu0 %417
      %419 = vrot.lane.b32.xlu0 %v374, 127
      %v420 = vpop.permute.xlu0 %419
      %421 = vrot.lane.b32.xlu0 %v375, 127
      %v422 = vpop.permute.xlu0 %421
      %423 = vrot.lane.b32.xlu0 %v376, 127
      %v424 = vpop.permute.xlu0 %423
      %425 = vrot.lane.b32.xlu0 %v377, 127
      %v426 = vpop.permute.xlu0 %425
      %427 = vrot.lane.b32.xlu0 %v378, 127
      %v428 = vpop.permute.xlu0 %427
      %429 = vrot.lane.b32.xlu0 %v379, 127
      %v430 = vpop.permute.xlu0 %429
      %431 = vrot.lane.b32.xlu0 %v380, 127
      %v432 = vpop.permute.xlu0 %431
      %433 = vrot.lane.b32.xlu0 %v381, 127
      %v434 = vpop.permute.xlu0 %433
      %435 = vrot.lane.b32.xlu0 %v382, 127
      %v436 = vpop.permute.xlu0 %435
      %437 = vrot.lane.b32.xlu0 %v383, 127
      %v438 = vpop.permute.xlu0 %437
      %439 = vrot.lane.b32.xlu0 %v384, 127
      %v440 = vpop.permute.xlu0 %439
      %441 = vrot.lane.b32.xlu0 %v385, 127
      %v442 = vpop.permute.xlu0 %441
      %443 = vrot.lane.b32.xlu0 %v386, 127
      %v444 = vpop.permute.xlu0 %443
      %445 = vrot.lane.b32.xlu0 %v387, 127
      %v446 = vpop.permute.xlu0 %445
      %447 = vrot.lane.b32.xlu0 %v388, 127
      %v448 = vpop.permute.xlu0 %447
      %vm449 = vcmask 1039360
      %v450 = vsel %vm449, %v410, %v412
      %v451 = vsel %vm449, %v412, %v414
      %v452 = vsel %vm449, %v414, %v416
      %v453 = vsel %vm449, %v418, %v420
      %v454 = vsel %vm449, %v420, %v422
      %v455 = vsel %vm449, %v422, %v424
      %v456 = vsel %vm449, %v426, %v428
      %v457 = vsel %vm449, %v428, %v430
      %v458 = vsel %vm449, %v430, %v432
      %v459 = vsel %vm449, %v434, %v436
      %v460 = vsel %vm449, %v436, %v438
      %v461 = vsel %vm449, %v438, %v440
      %v462 = vsel %vm449, %v442, %v444
      %v463 = vsel %vm449, %v444, %v446
      %v464 = vsel %vm449, %v446, %v448
      %480 = vst [vmem:[#allocation2 + $0x78] sm:$0xff] %v450
      %481 = vst [vmem:[#allocation2 + $0x80] sm:$0xff] %v451
      %482 = vst [vmem:[#allocation2 + $0x88] sm:$0xff] %v452
      %483 = vst [vmem:[#allocation2 + $0x90] sm:$0xff] %v453
      %484 = vst [vmem:[#allocation2 + $0x98] sm:$0xff] %v454
      %485 = vst [vmem:[#allocation2 + $0xa0] sm:$0xff] %v455
      %486 = vst [vmem:[#allocation2 + $0xa8] sm:$0xff] %v456
      %487 = vst [vmem:[#allocation2 + $0xb0] sm:$0xff] %v457
      %488 = vst [vmem:[#allocation2 + $0xb8] sm:$0xff] %v458
      %489 = vst [vmem:[#allocation2 + $0xc0] sm:$0xff] %v459
      %490 = vst [vmem:[#allocation2 + $0xc8] sm:$0xff] %v460
      %491 = vst [vmem:[#allocation2 + $0xd0] sm:$0xff] %v461
      %492 = vst [vmem:[#allocation2 + $0xd8] sm:$0xff] %v462
      %493 = vst [vmem:[#allocation2 + $0xe0] sm:$0xff] %v463
      %494 = vst [vmem:[#allocation2 + $0xe8] sm:$0xff] %v464
      %v495 = vld [vmem:[%s269] sm:$0xff]
      %v496 = vld [vmem:[%s269 + $0x8] sm:$0xff]
      %v497 = vld [vmem:[%s269 + $0x10] sm:$0xff]
      %v498 = vld [vmem:[%s269 + $0x18] sm:$0xff]
      %v499 = vld [vmem:[%s269 + $0x20] sm:$0xff]
      %v500 = vld [vmem:[%s269 + $0x28] sm:$0xff]
      %v501 = vld [vmem:[%s269 + $0x30] sm:$0xff]
      %v502 = vld [vmem:[%s269 + $0x38] sm:$0xff]
      %v503 = vld [vmem:[%s269 + $0x40] sm:$0xff]
      %v504 = vld [vmem:[%s269 + $0x48] sm:$0xff]
      %v505 = vld [vmem:[%s269 + $0x50] sm:$0xff]
      %v506 = vld [vmem:[%s269 + $0x58] sm:$0xff]
      %v507 = vld [vmem:[%s269 + $0x60] sm:$0xff]
      %v508 = vld [vmem:[%s269 + $0x68] sm:$0xff]
      %v509 = vld [vmem:[%s269 + $0x70] sm:$0xff]
      %v510 = vld [vmem:[%s269 + $0x78] sm:$0xff]
      %v511 = vld [vmem:[%s269 + $0x80] sm:$0xff]
      %v512 = vld [vmem:[%s269 + $0x88] sm:$0xff]
      %v513 = vld [vmem:[%s269 + $0x90] sm:$0xff]
      %v514 = vld [vmem:[%s269 + $0x98] sm:$0xff]
      %535 = vrot.lane.b32.xlu0 %v495, 126
      %v536 = vpop.permute.xlu0 %535
      %537 = vrot.lane.b32.xlu0 %v496, 126
      %v538 = vpop.permute.xlu0 %537
      %539 = vrot.lane.b32.xlu0 %v497, 126
      %v540 = vpop.permute.xlu0 %539
      %541 = vrot.lane.b32.xlu0 %v498, 126
      %v542 = vpop.permute.xlu0 %541
      %543 = vrot.lane.b32.xlu0 %v499, 126
      %v544 = vpop.permute.xlu0 %543
      %545 = vrot.lane.b32.xlu0 %v500, 126
      %v546 = vpop.permute.xlu0 %545
      %547 = vrot.lane.b32.xlu0 %v501, 126
      %v548 = vpop.permute.xlu0 %547
      %549 = vrot.lane.b32.xlu0 %v502, 126
      %v550 = vpop.permute.xlu0 %549
      %551 = vrot.lane.b32.xlu0 %v503, 126
      %v552 = vpop.permute.xlu0 %551
      %553 = vrot.lane.b32.xlu0 %v504, 126
      %v554 = vpop.permute.xlu0 %553
      %555 = vrot.lane.b32.xlu0 %v505, 126
      %v556 = vpop.permute.xlu0 %555
      %557 = vrot.lane.b32.xlu0 %v506, 126
      %v558 = vpop.permute.xlu0 %557
      %559 = vrot.lane.b32.xlu0 %v507, 126
      %v560 = vpop.permute.xlu0 %559
      %561 = vrot.lane.b32.xlu0 %v508, 126
      %v562 = vpop.permute.xlu0 %561
      %563 = vrot.lane.b32.xlu0 %v509, 126
      %v564 = vpop.permute.xlu0 %563
      %565 = vrot.lane.b32.xlu0 %v510, 126
      %v566 = vpop.permute.xlu0 %565
      %567 = vrot.lane.b32.xlu0 %v511, 126
      %v568 = vpop.permute.xlu0 %567
      %569 = vrot.lane.b32.xlu0 %v512, 126
      %v570 = vpop.permute.xlu0 %569
      %571 = vrot.lane.b32.xlu0 %v513, 126
      %v572 = vpop.permute.xlu0 %571
      %573 = vrot.lane.b32.xlu0 %v514, 126
      %v574 = vpop.permute.xlu0 %573
      %vm575 = vcmask 1031168
      %v576 = vsel %vm575, %v536, %v538
      %v577 = vsel %vm575, %v538, %v540
      %v578 = vsel %vm575, %v540, %v542
      %v579 = vsel %vm575, %v544, %v546
      %v580 = vsel %vm575, %v546, %v548
      %v581 = vsel %vm575, %v548, %v550
      %v582 = vsel %vm575, %v552, %v554
      %v583 = vsel %vm575, %v554, %v556
      %v584 = vsel %vm575, %v556, %v558
      %v585 = vsel %vm575, %v560, %v562
      %v586 = vsel %vm575, %v562, %v564
      %v587 = vsel %vm575, %v564, %v566
      %v588 = vsel %vm575, %v568, %v570
      %v589 = vsel %vm575, %v570, %v572
      %v590 = vsel %vm575, %v572, %v574
      %606 = vst [vmem:[#allocation2 + $0xf0] sm:$0xff] %v576
      %607 = vst [vmem:[#allocation2 + $0xf8] sm:$0xff] %v577
      %608 = vst [vmem:[#allocation2 + $0x100] sm:$0xff] %v578
      %609 = vst [vmem:[#allocation2 + $0x108] sm:$0xff] %v579
      %610 = vst [vmem:[#allocation2 + $0x110] sm:$0xff] %v580
      %611 = vst [vmem:[#allocation2 + $0x118] sm:$0xff] %v581
      %612 = vst [vmem:[#allocation2 + $0x120] sm:$0xff] %v582
      %613 = vst [vmem:[#allocation2 + $0x128] sm:$0xff] %v583
      %614 = vst [vmem:[#allocation2 + $0x130] sm:$0xff] %v584
      %615 = vst [vmem:[#allocation2 + $0x138] sm:$0xff] %v585
      %616 = vst [vmem:[#allocation2 + $0x140] sm:$0xff] %v586
      %617 = vst [vmem:[#allocation2 + $0x148] sm:$0xff] %v587
      %618 = vst [vmem:[#allocation2 + $0x150] sm:$0xff] %v588
      %619 = vst [vmem:[#allocation2 + $0x158] sm:$0xff] %v589
      %620 = vst [vmem:[#allocation2 + $0x160] sm:$0xff] %v590
      %v621 = vld [vmem:[%s269] sm:$0xff]
      %v622 = vld [vmem:[%s269 + $0x8] sm:$0xff]
      %v623 = vld [vmem:[%s269 + $0x10] sm:$0xff]
      %v624 = vld [vmem:[%s269 + $0x18] sm:$0xff]
      %v625 = vld [vmem:[%s269 + $0x20] sm:$0xff]
      %v626 = vld [vmem:[%s269 + $0x28] sm:$0xff]
      %v627 = vld [vmem:[%s269 + $0x30] sm:$0xff]
      %v628 = vld [vmem:[%s269 + $0x38] sm:$0xff]
      %v629 = vld [vmem:[%s269 + $0x40] sm:$0xff]
      %v630 = vld [vmem:[%s269 + $0x48] sm:$0xff]
      %v631 = vld [vmem:[%s269 + $0x50] sm:$0xff]
      %v632 = vld [vmem:[%s269 + $0x58] sm:$0xff]
      %v633 = vld [vmem:[%s269 + $0x60] sm:$0xff]
      %v634 = vld [vmem:[%s269 + $0x68] sm:$0xff]
      %v635 = vld [vmem:[%s269 + $0x70] sm:$0xff]
      %v636 = vld [vmem:[%s269 + $0x78] sm:$0xff]
      %v637 = vld [vmem:[%s269 + $0x80] sm:$0xff]
      %v638 = vld [vmem:[%s269 + $0x88] sm:$0xff]
      %v639 = vld [vmem:[%s269 + $0x90] sm:$0xff]
      %v640 = vld [vmem:[%s269 + $0x98] sm:$0xff]
      %661 = vrot.lane.b32.xlu0 %v621, 104
      %v662 = vpop.permute.xlu0 %661
      %663 = vrot.lane.b32.xlu0 %v622, 104
      %v664 = vpop.permute.xlu0 %663
      %665 = vrot.lane.b32.xlu0 %v623, 104
      %v666 = vpop.permute.xlu0 %665
      %667 = vrot.lane.b32.xlu0 %v624, 104
      %v668 = vpop.permute.xlu0 %667
      %669 = vrot.lane.b32.xlu0 %v625, 104
      %v670 = vpop.permute.xlu0 %669
      %671 = vrot.lane.b32.xlu0 %v626, 104
      %v672 = vpop.permute.xlu0 %671
      %673 = vrot.lane.b32.xlu0 %v627, 104
      %v674 = vpop.permute.xlu0 %673
      %675 = vrot.lane.b32.xlu0 %v628, 104
      %v676 = vpop.permute.xlu0 %675
      %677 = vrot.lane.b32.xlu0 %v629, 104
      %v678 = vpop.permute.xlu0 %677
      %679 = vrot.lane.b32.xlu0 %v630, 104
      %v680 = vpop.permute.xlu0 %679
      %681 = vrot.lane.b32.xlu0 %v631, 104
      %v682 = vpop.permute.xlu0 %681
      %683 = vrot.lane.b32.xlu0 %v632, 104
      %v684 = vpop.permute.xlu0 %683
      %685 = vrot.lane.b32.xlu0 %v633, 104
      %v686 = vpop.permute.xlu0 %685
      %687 = vrot.lane.b32.xlu0 %v634, 104
      %v688 = vpop.permute.xlu0 %687
      %689 = vrot.lane.b32.xlu0 %v635, 104
      %v690 = vpop.permute.xlu0 %689
      %691 = vrot.lane.b32.xlu0 %v636, 104
      %v692 = vpop.permute.xlu0 %691
      %693 = vrot.lane.b32.xlu0 %v637, 104
      %v694 = vpop.permute.xlu0 %693
      %695 = vrot.lane.b32.xlu0 %v638, 104
      %v696 = vpop.permute.xlu0 %695
      %697 = vrot.lane.b32.xlu0 %v639, 104
      %v698 = vpop.permute.xlu0 %697
      %699 = vrot.lane.b32.xlu0 %v640, 104
      %v700 = vpop.permute.xlu0 %699
      %vm701 = vcmask 850944
      %v702 = vsel %vm701, %v662, %v664
      %v703 = vsel %vm701, %v664, %v666
      %v704 = vsel %vm701, %v666, %v668
      %v705 = vsel %vm701, %v670, %v672
      %v706 = vsel %vm701, %v672, %v674
      %v707 = vsel %vm701, %v674, %v676
      %v708 = vsel %vm701, %v678, %v680
      %v709 = vsel %vm701, %v680, %v682
      %v710 = vsel %vm701, %v682, %v684
      %v711 = vsel %vm701, %v686, %v688
      %v712 = vsel %vm701, %v688, %v690
      %v713 = vsel %vm701, %v690, %v692
      %v714 = vsel %vm701, %v694, %v696
      %v715 = vsel %vm701, %v696, %v698
      %v716 = vsel %vm701, %v698, %v700
      %732 = vst [vmem:[#allocation2 + $0x168] sm:$0xff] %v702
      %733 = vst [vmem:[#allocation2 + $0x170] sm:$0xff] %v703
      %734 = vst [vmem:[#allocation2 + $0x178] sm:$0xff] %v704
      %735 = vst [vmem:[#allocation2 + $0x180] sm:$0xff] %v705
      %736 = vst [vmem:[#allocation2 + $0x188] sm:$0xff] %v706
      %737 = vst [vmem:[#allocation2 + $0x190] sm:$0xff] %v707
      %738 = vst [vmem:[#allocation2 + $0x198] sm:$0xff] %v708
      %739 = vst [vmem:[#allocation2 + $0x1a0] sm:$0xff] %v709
      %740 = vst [vmem:[#allocation2 + $0x1a8] sm:$0xff] %v710
      %741 = vst [vmem:[#allocation2 + $0x1b0] sm:$0xff] %v711
      %742 = vst [vmem:[#allocation2 + $0x1b8] sm:$0xff] %v712
      %743 = vst [vmem:[#allocation2 + $0x1c0] sm:$0xff] %v713
      %744 = vst [vmem:[#allocation2 + $0x1c8] sm:$0xff] %v714
      %745 = vst [vmem:[#allocation2 + $0x1d0] sm:$0xff] %v715
      %746 = vst [vmem:[#allocation2 + $0x1d8] sm:$0xff] %v716
      %v747 = vld [vmem:[%s269] sm:$0xff]
      %v748 = vld [vmem:[%s269 + $0x8] sm:$0xff]
      %v749 = vld [vmem:[%s269 + $0x10] sm:$0xff]
      %v750 = vld [vmem:[%s269 + $0x18] sm:$0xff]
      %v751 = vld [vmem:[%s269 + $0x20] sm:$0xff]
      %v752 = vld [vmem:[%s269 + $0x28] sm:$0xff]
      %v753 = vld [vmem:[%s269 + $0x30] sm:$0xff]
      %v754 = vld [vmem:[%s269 + $0x38] sm:$0xff]
      %v755 = vld [vmem:[%s269 + $0x40] sm:$0xff]
      %v756 = vld [vmem:[%s269 + $0x48] sm:$0xff]
      %v757 = vld [vmem:[%s269 + $0x50] sm:$0xff]
      %v758 = vld [vmem:[%s269 + $0x58] sm:$0xff]
      %v759 = vld [vmem:[%s269 + $0x60] sm:$0xff]
      %v760 = vld [vmem:[%s269 + $0x68] sm:$0xff]
      %v761 = vld [vmem:[%s269 + $0x70] sm:$0xff]
      %v762 = vld [vmem:[%s269 + $0x78] sm:$0xff]
      %v763 = vld [vmem:[%s269 + $0x80] sm:$0xff]
      %v764 = vld [vmem:[%s269 + $0x88] sm:$0xff]
      %v765 = vld [vmem:[%s269 + $0x90] sm:$0xff]
      %v766 = vld [vmem:[%s269 + $0x98] sm:$0xff]
      %787 = vrot.lane.b32.xlu0 %v747, 103
      %v788 = vpop.permute.xlu0 %787
      %789 = vrot.lane.b32.xlu0 %v748, 103
      %v790 = vpop.permute.xlu0 %789
      %791 = vrot.lane.b32.xlu0 %v749, 103
      %v792 = vpop.permute.xlu0 %791
      %793 = vrot.lane.b32.xlu0 %v750, 103
      %v794 = vpop.permute.xlu0 %793
      %795 = vrot.lane.b32.xlu0 %v751, 103
      %v796 = vpop.permute.xlu0 %795
      %797 = vrot.lane.b32.xlu0 %v752, 103
      %v798 = vpop.permute.xlu0 %797
      %799 = vrot.lane.b32.xlu0 %v753, 103
      %v800 = vpop.permute.xlu0 %799
      %801 = vrot.lane.b32.xlu0 %v754, 103
      %v802 = vpop.permute.xlu0 %801
      %803 = vrot.lane.b32.xlu0 %v755, 103
      %v804 = vpop.permute.xlu0 %803
      %805 = vrot.lane.b32.xlu0 %v756, 103
      %v806 = vpop.permute.xlu0 %805
      %807 = vrot.lane.b32.xlu0 %v757, 103
      %v808 = vpop.permute.xlu0 %807
      %809 = vrot.lane.b32.xlu0 %v758, 103
      %v810 = vpop.permute.xlu0 %809
      %811 = vrot.lane.b32.xlu0 %v759, 103
      %v812 = vpop.permute.xlu0 %811
      %813 = vrot.lane.b32.xlu0 %v760, 103
      %v814 = vpop.permute.xlu0 %813
      %815 = vrot.lane.b32.xlu0 %v761, 103
      %v816 = vpop.permute.xlu0 %815
      %817 = vrot.lane.b32.xlu0 %v762, 103
      %v818 = vpop.permute.xlu0 %817
      %819 = vrot.lane.b32.xlu0 %v763, 103
      %v820 = vpop.permute.xlu0 %819
      %821 = vrot.lane.b32.xlu0 %v764, 103
      %v822 = vpop.permute.xlu0 %821
      %823 = vrot.lane.b32.xlu0 %v765, 103
      %v824 = vpop.permute.xlu0 %823
      %825 = vrot.lane.b32.xlu0 %v766, 103
      %v826 = vpop.permute.xlu0 %825
      %vm827 = vcmask 842752
      %v828 = vsel %vm827, %v788, %v790
      %v829 = vsel %vm827, %v790, %v792
      %v830 = vsel %vm827, %v792, %v794
      %v831 = vsel %vm827, %v796, %v798
      %v832 = vsel %vm827, %v798, %v800
      %v833 = vsel %vm827, %v800, %v802
      %v834 = vsel %vm827, %v804, %v806
      %v835 = vsel %vm827, %v806, %v808
      %v836 = vsel %vm827, %v808, %v810
      %v837 = vsel %vm827, %v812, %v814
      %v838 = vsel %vm827, %v814, %v816
      %v839 = vsel %vm827, %v816, %v818
      %v840 = vsel %vm827, %v820, %v822
      %v841 = vsel %vm827, %v822, %v824
      %v842 = vsel %vm827, %v824, %v826
      %858 = vst [vmem:[#allocation2 + $0x1e0] sm:$0xff] %v828
      %859 = vst [vmem:[#allocation2 + $0x1e8] sm:$0xff] %v829
      %860 = vst [vmem:[#allocation2 + $0x1f0] sm:$0xff] %v830
      %861 = vst [vmem:[#allocation2 + $0x1f8] sm:$0xff] %v831
      %862 = vst [vmem:[#allocation2 + $0x200] sm:$0xff] %v832
      %863 = vst [vmem:[#allocation2 + $0x208] sm:$0xff] %v833
      %864 = vst [vmem:[#allocation2 + $0x210] sm:$0xff] %v834
      %865 = vst [vmem:[#allocation2 + $0x218] sm:$0xff] %v835
      %866 = vst [vmem:[#allocation2 + $0x220] sm:$0xff] %v836
      %867 = vst [vmem:[#allocation2 + $0x228] sm:$0xff] %v837
      %868 = vst [vmem:[#allocation2 + $0x230] sm:$0xff] %v838
      %869 = vst [vmem:[#allocation2 + $0x238] sm:$0xff] %v839
      %870 = vst [vmem:[#allocation2 + $0x240] sm:$0xff] %v840
      %871 = vst [vmem:[#allocation2 + $0x248] sm:$0xff] %v841
      %872 = vst [vmem:[#allocation2 + $0x250] sm:$0xff] %v842
      %v873 = vld [vmem:[%s269] sm:$0xff]
      %v874 = vld [vmem:[%s269 + $0x8] sm:$0xff]
      %v875 = vld [vmem:[%s269 + $0x10] sm:$0xff]
      %v876 = vld [vmem:[%s269 + $0x18] sm:$0xff]
      %v877 = vld [vmem:[%s269 + $0x20] sm:$0xff]
      %v878 = vld [vmem:[%s269 + $0x28] sm:$0xff]
      %v879 = vld [vmem:[%s269 + $0x30] sm:$0xff]
      %v880 = vld [vmem:[%s269 + $0x38] sm:$0xff]
      %v881 = vld [vmem:[%s269 + $0x40] sm:$0xff]
      %v882 = vld [vmem:[%s269 + $0x48] sm:$0xff]
      %v883 = vld [vmem:[%s269 + $0x50] sm:$0xff]
      %v884 = vld [vmem:[%s269 + $0x58] sm:$0xff]
      %v885 = vld [vmem:[%s269 + $0x60] sm:$0xff]
      %v886 = vld [vmem:[%s269 + $0x68] sm:$0xff]
      %v887 = vld [vmem:[%s269 + $0x70] sm:$0xff]
      %v888 = vld [vmem:[%s269 + $0x78] sm:$0xff]
      %v889 = vld [vmem:[%s269 + $0x80] sm:$0xff]
      %v890 = vld [vmem:[%s269 + $0x88] sm:$0xff]
      %v891 = vld [vmem:[%s269 + $0x90] sm:$0xff]
      %v892 = vld [vmem:[%s269 + $0x98] sm:$0xff]
      %913 = vrot.lane.b32.xlu0 %v873, 102
      %v914 = vpop.permute.xlu0 %913
      %915 = vrot.lane.b32.xlu0 %v874, 102
      %v916 = vpop.permute.xlu0 %915
      %917 = vrot.lane.b32.xlu0 %v875, 102
      %v918 = vpop.permute.xlu0 %917
      %919 = vrot.lane.b32.xlu0 %v876, 102
      %v920 = vpop.permute.xlu0 %919
      %921 = vrot.lane.b32.xlu0 %v877, 102
      %v922 = vpop.permute.xlu0 %921
      %923 = vrot.lane.b32.xlu0 %v878, 102
      %v924 = vpop.permute.xlu0 %923
      %925 = vrot.lane.b32.xlu0 %v879, 102
      %v926 = vpop.permute.xlu0 %925
      %927 = vrot.lane.b32.xlu0 %v880, 102
      %v928 = vpop.permute.xlu0 %927
      %929 = vrot.lane.b32.xlu0 %v881, 102
      %v930 = vpop.permute.xlu0 %929
      %931 = vrot.lane.b32.xlu0 %v882, 102
      %v932 = vpop.permute.xlu0 %931
      %933 = vrot.lane.b32.xlu0 %v883, 102
      %v934 = vpop.permute.xlu0 %933
      %935 = vrot.lane.b32.xlu0 %v884, 102
      %v936 = vpop.permute.xlu0 %935
      %937 = vrot.lane.b32.xlu0 %v885, 102
      %v938 = vpop.permute.xlu0 %937
      %939 = vrot.lane.b32.xlu0 %v886, 102
      %v940 = vpop.permute.xlu0 %939
      %941 = vrot.lane.b32.xlu0 %v887, 102
      %v942 = vpop.permute.xlu0 %941
      %943 = vrot.lane.b32.xlu0 %v888, 102
      %v944 = vpop.permute.xlu0 %943
      %945 = vrot.lane.b32.xlu0 %v889, 102
      %v946 = vpop.permute.xlu0 %945
      %947 = vrot.lane.b32.xlu0 %v890, 102
      %v948 = vpop.permute.xlu0 %947
      %949 = vrot.lane.b32.xlu0 %v891, 102
      %v950 = vpop.permute.xlu0 %949
      %951 = vrot.lane.b32.xlu0 %v892, 102
      %v952 = vpop.permute.xlu0 %951
      %vm953 = vcmask 834560
      %v954 = vsel %vm953, %v914, %v916
      %v955 = vsel %vm953, %v916, %v918
      %v956 = vsel %vm953, %v918, %v920
      %v957 = vsel %vm953, %v922, %v924
      %v958 = vsel %vm953, %v924, %v926
      %v959 = vsel %vm953, %v926, %v928
      %v960 = vsel %vm953, %v930, %v932
      %v961 = vsel %vm953, %v932, %v934
      %v962 = vsel %vm953, %v934, %v936
      %v963 = vsel %vm953, %v938, %v940
      %v964 = vsel %vm953, %v940, %v942
      %v965 = vsel %vm953, %v942, %v944
      %v966 = vsel %vm953, %v946, %v948
      %v967 = vsel %vm953, %v948, %v950
      %v968 = vsel %vm953, %v950, %v952
      %984 = vst [vmem:[#allocation2 + $0x258] sm:$0xff] %v954
      %985 = vst [vmem:[#allocation2 + $0x260] sm:$0xff] %v955
      %986 = vst [vmem:[#allocation2 + $0x268] sm:$0xff] %v956
      %987 = vst [vmem:[#allocation2 + $0x270] sm:$0xff] %v957
      %988 = vst [vmem:[#allocation2 + $0x278] sm:$0xff] %v958
      %989 = vst [vmem:[#allocation2 + $0x280] sm:$0xff] %v959
      %990 = vst [vmem:[#allocation2 + $0x288] sm:$0xff] %v960
      %991 = vst [vmem:[#allocation2 + $0x290] sm:$0xff] %v961
      %992 = vst [vmem:[#allocation2 + $0x298] sm:$0xff] %v962
      %993 = vst [vmem:[#allocation2 + $0x2a0] sm:$0xff] %v963
      %994 = vst [vmem:[#allocation2 + $0x2a8] sm:$0xff] %v964
      %995 = vst [vmem:[#allocation2 + $0x2b0] sm:$0xff] %v965
      %996 = vst [vmem:[#allocation2 + $0x2b8] sm:$0xff] %v966
      %997 = vst [vmem:[#allocation2 + $0x2c0] sm:$0xff] %v967
      %998 = vst [vmem:[#allocation2 + $0x2c8] sm:$0xff] %v968
      %v999 = vld [vmem:[%s269] sm:$0xff]
      %v1000 = vld [vmem:[%s269 + $0x8] sm:$0xff]
      %v1001 = vld [vmem:[%s269 + $0x10] sm:$0xff]
      %v1002 = vld [vmem:[%s269 + $0x18] sm:$0xff]
      %v1003 = vld [vmem:[%s269 + $0x20] sm:$0xff]
      %v1004 = vld [vmem:[%s269 + $0x28] sm:$0xff]
      %v1005 = vld [vmem:[%s269 + $0x30] sm:$0xff]
      %v1006 = vld [vmem:[%s269 + $0x38] sm:$0xff]
      %v1007 = vld [vmem:[%s269 + $0x40] sm:$0xff]
      %v1008 = vld [vmem:[%s269 + $0x48] sm:$0xff]
      %v1009 = vld [vmem:[%s269 + $0x50] sm:$0xff]
      %v1010 = vld [vmem:[%s269 + $0x58] sm:$0xff]
      %v1011 = vld [vmem:[%s269 + $0x60] sm:$0xff]
      %v1012 = vld [vmem:[%s269 + $0x68] sm:$0xff]
      %v1013 = vld [vmem:[%s269 + $0x70] sm:$0xff]
      %v1014 = vld [vmem:[%s269 + $0x78] sm:$0xff]
      %v1015 = vld [vmem:[%s269 + $0x80] sm:$0xff]
      %v1016 = vld [vmem:[%s269 + $0x88] sm:$0xff]
      %v1017 = vld [vmem:[%s269 + $0x90] sm:$0xff]
      %v1018 = vld [vmem:[%s269 + $0x98] sm:$0xff]
      %1039 = vrot.lane.b32.xlu0 %v999, 80
      %v1040 = vpop.permute.xlu0 %1039
      %1041 = vrot.lane.b32.xlu0 %v1000, 80
      %v1042 = vpop.permute.xlu0 %1041
      %1043 = vrot.lane.b32.xlu0 %v1001, 80
      %v1044 = vpop.permute.xlu0 %1043
      %1045 = vrot.lane.b32.xlu0 %v1002, 80
      %v1046 = vpop.permute.xlu0 %1045
      %1047 = vrot.lane.b32.xlu0 %v1003, 80
      %v1048 = vpop.permute.xlu0 %1047
      %1049 = vrot.lane.b32.xlu0 %v1004, 80
      %v1050 = vpop.permute.xlu0 %1049
      %1051 = vrot.lane.b32.xlu0 %v1005, 80
      %v1052 = vpop.permute.xlu0 %1051
      %1053 = vrot.lane.b32.xlu0 %v1006, 80
      %v1054 = vpop.permute.xlu0 %1053
      %1055 = vrot.lane.b32.xlu0 %v1007, 80
      %v1056 = vpop.permute.xlu0 %1055
      %1057 = vrot.lane.b32.xlu0 %v1008, 80
      %v1058 = vpop.permute.xlu0 %1057
      %1059 = vrot.lane.b32.xlu0 %v1009, 80
      %v1060 = vpop.permute.xlu0 %1059
      %1061 = vrot.lane.b32.xlu0 %v1010, 80
      %v1062 = vpop.permute.xlu0 %1061
      %1063 = vrot.lane.b32.xlu0 %v1011, 80
      %v1064 = vpop.permute.xlu0 %1063
      %1065 = vrot.lane.b32.xlu0 %v1012, 80
      %v1066 = vpop.permute.xlu0 %1065
      %1067 = vrot.lane.b32.xlu0 %v1013, 80
      %v1068 = vpop.permute.xlu0 %1067
      %1069 = vrot.lane.b32.xlu0 %v1014, 80
      %v1070 = vpop.permute.xlu0 %1069
      %1071 = vrot.lane.b32.xlu0 %v1015, 80
      %v1072 = vpop.permute.xlu0 %1071
      %1073 = vrot.lane.b32.xlu0 %v1016, 80
      %v1074 = vpop.permute.xlu0 %1073
      %1075 = vrot.lane.b32.xlu0 %v1017, 80
      %v1076 = vpop.permute.xlu0 %1075
      %1077 = vrot.lane.b32.xlu0 %v1018, 80
      %v1078 = vpop.permute.xlu0 %1077
      %vm1079 = vcmask 654336
      %v1080 = vsel %vm1079, %v1040, %v1042
      %v1081 = vsel %vm1079, %v1042, %v1044
      %v1082 = vsel %vm1079, %v1044, %v1046
      %v1083 = vsel %vm1079, %v1048, %v1050
      %v1084 = vsel %vm1079, %v1050, %v1052
      %v1085 = vsel %vm1079, %v1052, %v1054
      %v1086 = vsel %vm1079, %v1056, %v1058
      %v1087 = vsel %vm1079, %v1058, %v1060
      %v1088 = vsel %vm1079, %v1060, %v1062
      %v1089 = vsel %vm1079, %v1064, %v1066
      %v1090 = vsel %vm1079, %v1066, %v1068
      %v1091 = vsel %vm1079, %v1068, %v1070
      %v1092 = vsel %vm1079, %v1072, %v1074
      %v1093 = vsel %vm1079, %v1074, %v1076
      %v1094 = vsel %vm1079, %v1076, %v1078
      %1110 = vst [vmem:[#allocation2 + $0x2d0] sm:$0xff] %v1080
      %1111 = vst [vmem:[#allocation2 + $0x2d8] sm:$0xff] %v1081
      %1112 = vst [vmem:[#allocation2 + $0x2e0] sm:$0xff] %v1082
      %1113 = vst [vmem:[#allocation2 + $0x2e8] sm:$0xff] %v1083
      %1114 = vst [vmem:[#allocation2 + $0x2f0] sm:$0xff] %v1084
      %1115 = vst [vmem:[#allocation2 + $0x2f8] sm:$0xff] %v1085
      %1116 = vst [vmem:[#allocation2 + $0x300] sm:$0xff] %v1086
      %1117 = vst [vmem:[#allocation2 + $0x308] sm:$0xff] %v1087
      %1118 = vst [vmem:[#allocation2 + $0x310] sm:$0xff] %v1088
      %1119 = vst [vmem:[#allocation2 + $0x318] sm:$0xff] %v1089
      %1120 = vst [vmem:[#allocation2 + $0x320] sm:$0xff] %v1090
      %1121 = vst [vmem:[#allocation2 + $0x328] sm:$0xff] %v1091
      %1122 = vst [vmem:[#allocation2 + $0x330] sm:$0xff] %v1092
      %1123 = vst [vmem:[#allocation2 + $0x338] sm:$0xff] %v1093
      %1124 = vst [vmem:[#allocation2 + $0x340] sm:$0xff] %v1094
      %v1125 = vld [vmem:[%s269] sm:$0xff]
      %v1126 = vld [vmem:[%s269 + $0x8] sm:$0xff]
      %v1127 = vld [vmem:[%s269 + $0x10] sm:$0xff]
      %v1128 = vld [vmem:[%s269 + $0x18] sm:$0xff]
      %v1129 = vld [vmem:[%s269 + $0x20] sm:$0xff]
      %v1130 = vld [vmem:[%s269 + $0x28] sm:$0xff]
      %v1131 = vld [vmem:[%s269 + $0x30] sm:$0xff]
      %v1132 = vld [vmem:[%s269 + $0x38] sm:$0xff]
      %v1133 = vld [vmem:[%s269 + $0x40] sm:$0xff]
      %v1134 = vld [vmem:[%s269 + $0x48] sm:$0xff]
      %v1135 = vld [vmem:[%s269 + $0x50] sm:$0xff]
      %v1136 = vld [vmem:[%s269 + $0x58] sm:$0xff]
      %v1137 = vld [vmem:[%s269 + $0x60] sm:$0xff]
      %v1138 = vld [vmem:[%s269 + $0x68] sm:$0xff]
      %v1139 = vld [vmem:[%s269 + $0x70] sm:$0xff]
      %v1140 = vld [vmem:[%s269 + $0x78] sm:$0xff]
      %v1141 = vld [vmem:[%s269 + $0x80] sm:$0xff]
      %v1142 = vld [vmem:[%s269 + $0x88] sm:$0xff]
      %v1143 = vld [vmem:[%s269 + $0x90] sm:$0xff]
      %v1144 = vld [vmem:[%s269 + $0x98] sm:$0xff]
      %1165 = vrot.lane.b32.xlu0 %v1125, 79
      %v1166 = vpop.permute.xlu0 %1165
      %1167 = vrot.lane.b32.xlu0 %v1126, 79
      %v1168 = vpop.permute.xlu0 %1167
      %1169 = vrot.lane.b32.xlu0 %v1127, 79
      %v1170 = vpop.permute.xlu0 %1169
      %1171 = vrot.lane.b32.xlu0 %v1128, 79
      %v1172 = vpop.permute.xlu0 %1171
      %1173 = vrot.lane.b32.xlu0 %v1129, 79
      %v1174 = vpop.permute.xlu0 %1173
      %1175 = vrot.lane.b32.xlu0 %v1130, 79
      %v1176 = vpop.permute.xlu0 %1175
      %1177 = vrot.lane.b32.xlu0 %v1131, 79
      %v1178 = vpop.permute.xlu0 %1177
      %1179 = vrot.lane.b32.xlu0 %v1132, 79
      %v1180 = vpop.permute.xlu0 %1179
      %1181 = vrot.lane.b32.xlu0 %v1133, 79
      %v1182 = vpop.permute.xlu0 %1181
      %1183 = vrot.lane.b32.xlu0 %v1134, 79
      %v1184 = vpop.permute.xlu0 %1183
      %1185 = vrot.lane.b32.xlu0 %v1135, 79
      %v1186 = vpop.permute.xlu0 %1185
      %1187 = vrot.lane.b32.xlu0 %v1136, 79
      %v1188 = vpop.permute.xlu0 %1187
      %1189 = vrot.lane.b32.xlu0 %v1137, 79
      %v1190 = vpop.permute.xlu0 %1189
      %1191 = vrot.lane.b32.xlu0 %v1138, 79
      %v1192 = vpop.permute.xlu0 %1191
      %1193 = vrot.lane.b32.xlu0 %v1139, 79
      %v1194 = vpop.permute.xlu0 %1193
      %1195 = vrot.lane.b32.xlu0 %v1140, 79
      %v1196 = vpop.permute.xlu0 %1195
      %1197 = vrot.lane.b32.xlu0 %v1141, 79
      %v1198 = vpop.permute.xlu0 %1197
      %1199 = vrot.lane.b32.xlu0 %v1142, 79
      %v1200 = vpop.permute.xlu0 %1199
      %1201 = vrot.lane.b32.xlu0 %v1143, 79
      %v1202 = vpop.permute.xlu0 %1201
      %1203 = vrot.lane.b32.xlu0 %v1144, 79
      %v1204 = vpop.permute.xlu0 %1203
      %vm1205 = vcmask 646144
      %v1206 = vsel %vm1205, %v1166, %v1168
      %v1207 = vsel %vm1205, %v1168, %v1170
      %v1208 = vsel %vm1205, %v1170, %v1172
      %v1209 = vsel %vm1205, %v1174, %v1176
      %v1210 = vsel %vm1205, %v1176, %v1178
      %v1211 = vsel %vm1205, %v1178, %v1180
      %v1212 = vsel %vm1205, %v1182, %v1184
      %v1213 = vsel %vm1205, %v1184, %v1186
      %v1214 = vsel %vm1205, %v1186, %v1188
      %v1215 = vsel %vm1205, %v1190, %v1192
      %v1216 = vsel %vm1205, %v1192, %v1194
      %v1217 = vsel %vm1205, %v1194, %v1196
      %v1218 = vsel %vm1205, %v1198, %v1200
      %v1219 = vsel %vm1205, %v1200, %v1202
      %v1220 = vsel %vm1205, %v1202, %v1204
      %1236 = vst [vmem:[#allocation2 + $0x348] sm:$0xff] %v1206
      %1237 = vst [vmem:[#allocation2 + $0x350] sm:$0xff] %v1207
      %1238 = vst [vmem:[#allocation2 + $0x358] sm:$0xff] %v1208
      %1239 = vst [vmem:[#allocation2 + $0x360] sm:$0xff] %v1209
      %1240 = vst [vmem:[#allocation2 + $0x368] sm:$0xff] %v1210
      %1241 = vst [vmem:[#allocation2 + $0x370] sm:$0xff] %v1211
      %1242 = vst [vmem:[#allocation2 + $0x378] sm:$0xff] %v1212
      %1243 = vst [vmem:[#allocation2 + $0x380] sm:$0xff] %v1213
      %1244 = vst [vmem:[#allocation2 + $0x388] sm:$0xff] %v1214
      %1245 = vst [vmem:[#allocation2 + $0x390] sm:$0xff] %v1215
      %1246 = vst [vmem:[#allocation2 + $0x398] sm:$0xff] %v1216
      %1247 = vst [vmem:[#allocation2 + $0x3a0] sm:$0xff] %v1217
      %1248 = vst [vmem:[#allocation2 + $0x3a8] sm:$0xff] %v1218
      %1249 = vst [vmem:[#allocation2 + $0x3b0] sm:$0xff] %v1219
      %1250 = vst [vmem:[#allocation2 + $0x3b8] sm:$0xff] %v1220
      %v1251 = vld [vmem:[%s269] sm:$0xff]
      %v1252 = vld [vmem:[%s269 + $0x8] sm:$0xff]
      %v1253 = vld [vmem:[%s269 + $0x10] sm:$0xff]
      %v1254 = vld [vmem:[%s269 + $0x18] sm:$0xff]
      %v1255 = vld [vmem:[%s269 + $0x20] sm:$0xff]
      %v1256 = vld [vmem:[%s269 + $0x28] sm:$0xff]
      %v1257 = vld [vmem:[%s269 + $0x30] sm:$0xff]
      %v1258 = vld [vmem:[%s269 + $0x38] sm:$0xff]
      %v1259 = vld [vmem:[%s269 + $0x40] sm:$0xff]
      %v1260 = vld [vmem:[%s269 + $0x48] sm:$0xff]
      %v1261 = vld [vmem:[%s269 + $0x50] sm:$0xff]
      %v1262 = vld [vmem:[%s269 + $0x58] sm:$0xff]
      %v1263 = vld [vmem:[%s269 + $0x60] sm:$0xff]
      %v1264 = vld [vmem:[%s269 + $0x68] sm:$0xff]
      %v1265 = vld [vmem:[%s269 + $0x70] sm:$0xff]
      %v1266 = vld [vmem:[%s269 + $0x78] sm:$0xff]
      %v1267 = vld [vmem:[%s269 + $0x80] sm:$0xff]
      %v1268 = vld [vmem:[%s269 + $0x88] sm:$0xff]
      %v1269 = vld [vmem:[%s269 + $0x90] sm:$0xff]
      %v1270 = vld [vmem:[%s269 + $0x98] sm:$0xff]
      %1291 = vrot.lane.b32.xlu0 %v1251, 78
      %v1292 = vpop.permute.xlu0 %1291
      %1293 = vrot.lane.b32.xlu0 %v1252, 78
      %v1294 = vpop.permute.xlu0 %1293
      %1295 = vrot.lane.b32.xlu0 %v1253, 78
      %v1296 = vpop.permute.xlu0 %1295
      %1297 = vrot.lane.b32.xlu0 %v1254, 78
      %v1298 = vpop.permute.xlu0 %1297
      %1299 = vrot.lane.b32.xlu0 %v1255, 78
      %v1300 = vpop.permute.xlu0 %1299
      %1301 = vrot.lane.b32.xlu0 %v1256, 78
      %v1302 = vpop.permute.xlu0 %1301
      %1303 = vrot.lane.b32.xlu0 %v1257, 78
      %v1304 = vpop.permute.xlu0 %1303
      %1305 = vrot.lane.b32.xlu0 %v1258, 78
      %v1306 = vpop.permute.xlu0 %1305
      %1307 = vrot.lane.b32.xlu0 %v1259, 78
      %v1308 = vpop.permute.xlu0 %1307
      %1309 = vrot.lane.b32.xlu0 %v1260, 78
      %v1310 = vpop.permute.xlu0 %1309
      %1311 = vrot.lane.b32.xlu0 %v1261, 78
      %v1312 = vpop.permute.xlu0 %1311
      %1313 = vrot.lane.b32.xlu0 %v1262, 78
      %v1314 = vpop.permute.xlu0 %1313
      %1315 = vrot.lane.b32.xlu0 %v1263, 78
      %v1316 = vpop.permute.xlu0 %1315
      %1317 = vrot.lane.b32.xlu0 %v1264, 78
      %v1318 = vpop.permute.xlu0 %1317
      %1319 = vrot.lane.b32.xlu0 %v1265, 78
      %v1320 = vpop.permute.xlu0 %1319
      %1321 = vrot.lane.b32.xlu0 %v1266, 78
      %v1322 = vpop.permute.xlu0 %1321
      %1323 = vrot.lane.b32.xlu0 %v1267, 78
      %v1324 = vpop.permute.xlu0 %1323
      %1325 = vrot.lane.b32.xlu0 %v1268, 78
      %v1326 = vpop.permute.xlu0 %1325
      %1327 = vrot.lane.b32.xlu0 %v1269, 78
      %v1328 = vpop.permute.xlu0 %1327
      %1329 = vrot.lane.b32.xlu0 %v1270, 78
      %v1330 = vpop.permute.xlu0 %1329
      %vm1331 = vcmask 637952
      %v1332 = vsel %vm1331, %v1292, %v1294
      %v1333 = vsel %vm1331, %v1294, %v1296
      %v1334 = vsel %vm1331, %v1296, %v1298
      %v1335 = vsel %vm1331, %v1300, %v1302
      %v1336 = vsel %vm1331, %v1302, %v1304
      %v1337 = vsel %vm1331, %v1304, %v1306
      %v1338 = vsel %vm1331, %v1308, %v1310
      %v1339 = vsel %vm1331, %v1310, %v1312
      %v1340 = vsel %vm1331, %v1312, %v1314
      %v1341 = vsel %vm1331, %v1316, %v1318
      %v1342 = vsel %vm1331, %v1318, %v1320
      %v1343 = vsel %vm1331, %v1320, %v1322
      %v1344 = vsel %vm1331, %v1324, %v1326
      %v1345 = vsel %vm1331, %v1326, %v1328
      %v1346 = vsel %vm1331, %v1328, %v1330
      %1362 = vst [vmem:[#allocation2 + $0x3c0] sm:$0xff] %v1332
      %1363 = vst [vmem:[#allocation2 + $0x3c8] sm:$0xff] %v1333
      %1364 = vst [vmem:[#allocation2 + $0x3d0] sm:$0xff] %v1334
      %1365 = vst [vmem:[#allocation2 + $0x3d8] sm:$0xff] %v1335
      %1366 = vst [vmem:[#allocation2 + $0x3e0] sm:$0xff] %v1336
      %1367 = vst [vmem:[#allocation2 + $0x3e8] sm:$0xff] %v1337
      %1368 = vst [vmem:[#allocation2 + $0x3f0] sm:$0xff] %v1338
      %1369 = vst [vmem:[#allocation2 + $0x3f8] sm:$0xff] %v1339
      %1370 = vst [vmem:[#allocation2 + $0x400] sm:$0xff] %v1340
      %1371 = vst [vmem:[#allocation2 + $0x408] sm:$0xff] %v1341
      %1372 = vst [vmem:[#allocation2 + $0x410] sm:$0xff] %v1342
      %1373 = vst [vmem:[#allocation2 + $0x418] sm:$0xff] %v1343
      %1374 = vst [vmem:[#allocation2 + $0x420] sm:$0xff] %v1344
      %1375 = vst [vmem:[#allocation2 + $0x428] sm:$0xff] %v1345
      %1376 = vst [vmem:[#allocation2 + $0x430] sm:$0xff] %v1346
      %v1377 = vld [vmem:[%s2] sm:$0xff]
      %v1378 = vld [vmem:[%s2 + $0x8] sm:$0xff]
      %v1379 = vld [vmem:[%s2 + $0x10] sm:$0xff]
      %v1380 = vld [vmem:[%s2 + $0x18] sm:$0xff]
      %v1381 = vld [vmem:[%s2 + $0x20] sm:$0xff]
      %v1382 = vld [vmem:[%s2 + $0x28] sm:$0xff]
      %v1383 = vld [vmem:[%s2 + $0x30] sm:$0xff]
      %v1384 = vld [vmem:[%s2 + $0x38] sm:$0xff]
      %v1385 = vld [vmem:[%s2 + $0x40] sm:$0xff]
      %v1386 = vld [vmem:[%s2 + $0x48] sm:$0xff]
      %v1387 = vld [vmem:[%s2 + $0x50] sm:$0xff]
      %v1388 = vld [vmem:[%s2 + $0x58] sm:$0xff]
      %v1389 = vld [vmem:[%s2 + $0x60] sm:$0xff]
      %v1390 = vld [vmem:[%s2 + $0x68] sm:$0xff]
      %v1391 = vld [vmem:[%s2 + $0x70] sm:$0xff]
      %v1392 = vld [vmem:[%s2 + $0x78] sm:$0xff]
      %v1393 = vld [vmem:[%s2 + $0x80] sm:$0xff]
      %v1394 = vld [vmem:[%s2 + $0x88] sm:$0xff]
      %v1395 = vld [vmem:[%s2 + $0x90] sm:$0xff]
      %v1396 = vld [vmem:[%s2 + $0x98] sm:$0xff]
      %v1397 = vld [vmem:[%s2 + $0xa0] sm:$0xff]
      %v1398 = vld [vmem:[%s2 + $0xa8] sm:$0xff]
      %v1399 = vld [vmem:[%s2 + $0xb0] sm:$0xff]
      %v1400 = vld [vmem:[%s2 + $0xb8] sm:$0xff]
      %v1401 = vld [vmem:[%s2 + $0xc0] sm:$0xff]
      %v1402 = vld [vmem:[%s2 + $0xc8] sm:$0xff]
      %v1403 = vld [vmem:[%s2 + $0xd0] sm:$0xff]
      %v1404 = vld [vmem:[%s2 + $0xd8] sm:$0xff]
      %v1405 = vld [vmem:[%s2 + $0xe0] sm:$0xff]
      %v1406 = vld [vmem:[%s2 + $0xe8] sm:$0xff]
      %v1407 = vld [vmem:[%s2 + $0xf0] sm:$0xff]
      %v1408 = vld [vmem:[%s2 + $0xf8] sm:$0xff]
      %v1409 = vld [vmem:[%s2 + $0x100] sm:$0xff]
      %v1410 = vld [vmem:[%s2 + $0x108] sm:$0xff]
      %v1411 = vld [vmem:[%s2 + $0x110] sm:$0xff]
      %v1412 = vld [vmem:[%s2 + $0x118] sm:$0xff]
      %v1413 = vld [vmem:[%s2 + $0x120] sm:$0xff]
      %v1414 = vld [vmem:[%s2 + $0x128] sm:$0xff]
      %v1415 = vld [vmem:[%s2 + $0x130] sm:$0xff]
      %v1416 = vld [vmem:[%s2 + $0x138] sm:$0xff]
      %v1417 = vld [vmem:[%s2 + $0x140] sm:$0xff]
      %v1418 = vld [vmem:[%s2 + $0x148] sm:$0xff]
      %v1419 = vld [vmem:[%s2 + $0x150] sm:$0xff]
      %v1420 = vld [vmem:[%s2 + $0x158] sm:$0xff]
      %v1421 = vld [vmem:[%s2 + $0x160] sm:$0xff]
      %v1422 = vld [vmem:[%s2 + $0x168] sm:$0xff]
      %v1423 = vld [vmem:[%s2 + $0x170] sm:$0xff]
      %v1424 = vld [vmem:[%s2 + $0x178] sm:$0xff]
      %v1425 = vld [vmem:[#allocation2] sm:$0xff]
      %v1426 = vld [vmem:[#allocation2 + $0x8] sm:$0xff]
      %v1427 = vld [vmem:[#allocation2 + $0x10] sm:$0xff]
      %v1428 = vld [vmem:[#allocation2 + $0x18] sm:$0xff]
      %v1429 = vld [vmem:[#allocation2 + $0x20] sm:$0xff]
      %v1430 = vld [vmem:[#allocation2 + $0x28] sm:$0xff]
      %v1431 = vld [vmem:[#allocation2 + $0x30] sm:$0xff]
      %v1432 = vld [vmem:[#allocation2 + $0x38] sm:$0xff]
      %v1433 = vld [vmem:[#allocation2 + $0x40] sm:$0xff]
      %v1434 = vld [vmem:[#allocation2 + $0x48] sm:$0xff]
      %v1435 = vld [vmem:[#allocation2 + $0x50] sm:$0xff]
      %v1436 = vld [vmem:[#allocation2 + $0x58] sm:$0xff]
      %v1437 = vld [vmem:[#allocation2 + $0x60] sm:$0xff]
      %v1438 = vld [vmem:[#allocation2 + $0x68] sm:$0xff]
      %v1439 = vld [vmem:[#allocation2 + $0x70] sm:$0xff]
      %v1440 = vld [vmem:[#allocation2 + $0x78] sm:$0xff]
      %v1441 = vld [vmem:[#allocation2 + $0x80] sm:$0xff]
      %v1442 = vld [vmem:[#allocation2 + $0x88] sm:$0xff]
      %v1443 = vld [vmem:[#allocation2 + $0x90] sm:$0xff]
      %v1444 = vld [vmem:[#allocation2 + $0x98] sm:$0xff]
      %v1445 = vld [vmem:[#allocation2 + $0xa0] sm:$0xff]
      %v1446 = vld [vmem:[#allocation2 + $0xa8] sm:$0xff]
      %v1447 = vld [vmem:[#allocation2 + $0xb0] sm:$0xff]
      %v1448 = vld [vmem:[#allocation2 + $0xb8] sm:$0xff]
      %v1449 = vld [vmem:[#allocation2 + $0xc0] sm:$0xff]
      %v1450 = vld [vmem:[#allocation2 + $0xc8] sm:$0xff]
      %v1451 = vld [vmem:[#allocation2 + $0xd0] sm:$0xff]
      %v1452 = vld [vmem:[#allocation2 + $0xd8] sm:$0xff]
      %v1453 = vld [vmem:[#allocation2 + $0xe0] sm:$0xff]
      %v1454 = vld [vmem:[#allocation2 + $0xe8] sm:$0xff]
      %v1455 = vld [vmem:[#allocation2 + $0xf0] sm:$0xff]
      %v1456 = vld [vmem:[#allocation2 + $0xf8] sm:$0xff]
      %v1457 = vld [vmem:[#allocation2 + $0x100] sm:$0xff]
      %v1458 = vld [vmem:[#allocation2 + $0x108] sm:$0xff]
      %v1459 = vld [vmem:[#allocation2 + $0x110] sm:$0xff]
      %v1460 = vld [vmem:[#allocation2 + $0x118] sm:$0xff]
      %v1461 = vld [vmem:[#allocation2 + $0x120] sm:$0xff]
      %v1462 = vld [vmem:[#allocation2 + $0x128] sm:$0xff]
      %v1463 = vld [vmem:[#allocation2 + $0x130] sm:$0xff]
      %v1464 = vld [vmem:[#allocation2 + $0x138] sm:$0xff]
      %v1465 = vld [vmem:[#allocation2 + $0x140] sm:$0xff]
      %v1466 = vld [vmem:[#allocation2 + $0x148] sm:$0xff]
      %v1467 = vld [vmem:[#allocation2 + $0x150] sm:$0xff]
      %v1468 = vld [vmem:[#allocation2 + $0x158] sm:$0xff]
      %v1469 = vld [vmem:[#allocation2 + $0x160] sm:$0xff]
      %v1470 = vld [vmem:[#allocation2 + $0x168] sm:$0xff]
      %v1471 = vld [vmem:[#allocation2 + $0x170] sm:$0xff]
      %v1472 = vld [vmem:[#allocation2 + $0x178] sm:$0xff]
      %v1473 = vld [vmem:[#allocation2 + $0x180] sm:$0xff]
      %v1474 = vld [vmem:[#allocation2 + $0x188] sm:$0xff]
      %v1475 = vld [vmem:[#allocation2 + $0x190] sm:$0xff]
      %v1476 = vld [vmem:[#allocation2 + $0x198] sm:$0xff]
      %v1477 = vld [vmem:[#allocation2 + $0x1a0] sm:$0xff]
      %v1478 = vld [vmem:[#allocation2 + $0x1a8] sm:$0xff]
      %v1479 = vld [vmem:[#allocation2 + $0x1b0] sm:$0xff]
      %v1480 = vld [vmem:[#allocation2 + $0x1b8] sm:$0xff]
      %v1481 = vld [vmem:[#allocation2 + $0x1c0] sm:$0xff]
      %v1482 = vld [vmem:[#allocation2 + $0x1c8] sm:$0xff]
      %v1483 = vld [vmem:[#allocation2 + $0x1d0] sm:$0xff]
      %v1484 = vld [vmem:[#allocation2 + $0x1d8] sm:$0xff]
      %v1485 = vld [vmem:[#allocation2 + $0x1e0] sm:$0xff]
      %v1486 = vld [vmem:[#allocation2 + $0x1e8] sm:$0xff]
      %v1487 = vld [vmem:[#allocation2 + $0x1f0] sm:$0xff]
      %v1488 = vld [vmem:[#allocation2 + $0x1f8] sm:$0xff]
      %v1489 = vld [vmem:[#allocation2 + $0x200] sm:$0xff]
      %v1490 = vld [vmem:[#allocation2 + $0x208] sm:$0xff]
      %v1491 = vld [vmem:[#allocation2 + $0x210] sm:$0xff]
      %v1492 = vld [vmem:[#allocation2 + $0x218] sm:$0xff]
      %v1493 = vld [vmem:[#allocation2 + $0x220] sm:$0xff]
      %v1494 = vld [vmem:[#allocation2 + $0x228] sm:$0xff]
      %v1495 = vld [vmem:[#allocation2 + $0x230] sm:$0xff]
      %v1496 = vld [vmem:[#allocation2 + $0x238] sm:$0xff]
      %v1497 = vld [vmem:[#allocation2 + $0x240] sm:$0xff]
      %v1498 = vld [vmem:[#allocation2 + $0x248] sm:$0xff]
      %v1499 = vld [vmem:[#allocation2 + $0x250] sm:$0xff]
      %v1500 = vld [vmem:[#allocation2 + $0x258] sm:$0xff]
      %v1501 = vld [vmem:[#allocation2 + $0x260] sm:$0xff]
      %v1502 = vld [vmem:[#allocation2 + $0x268] sm:$0xff]
      %v1503 = vld [vmem:[#allocation2 + $0x270] sm:$0xff]
      %v1504 = vld [vmem:[#allocation2 + $0x278] sm:$0xff]
      %v1505 = vld [vmem:[#allocation2 + $0x280] sm:$0xff]
      %v1506 = vld [vmem:[#allocation2 + $0x288] sm:$0xff]
      %v1507 = vld [vmem:[#allocation2 + $0x290] sm:$0xff]
      %v1508 = vld [vmem:[#allocation2 + $0x298] sm:$0xff]
      %v1509 = vld [vmem:[#allocation2 + $0x2a0] sm:$0xff]
      %v1510 = vld [vmem:[#allocation2 + $0x2a8] sm:$0xff]
      %v1511 = vld [vmem:[#allocation2 + $0x2b0] sm:$0xff]
      %v1512 = vld [vmem:[#allocation2 + $0x2b8] sm:$0xff]
      %v1513 = vld [vmem:[#allocation2 + $0x2c0] sm:$0xff]
      %v1514 = vld [vmem:[#allocation2 + $0x2c8] sm:$0xff]
      %v1515 = vld [vmem:[#allocation2 + $0x2d0] sm:$0xff]
      %v1516 = vld [vmem:[#allocation2 + $0x2d8] sm:$0xff]
      %v1517 = vld [vmem:[#allocation2 + $0x2e0] sm:$0xff]
      %v1518 = vld [vmem:[#allocation2 + $0x2e8] sm:$0xff]
      %v1519 = vld [vmem:[#allocation2 + $0x2f0] sm:$0xff]
      %v1520 = vld [vmem:[#allocation2 + $0x2f8] sm:$0xff]
      %v1521 = vld [vmem:[#allocation2 + $0x300] sm:$0xff]
      %v1522 = vld [vmem:[#allocation2 + $0x308] sm:$0xff]
      %v1523 = vld [vmem:[#allocation2 + $0x310] sm:$0xff]
      %v1524 = vld [vmem:[#allocation2 + $0x318] sm:$0xff]
      %v1525 = vld [vmem:[#allocation2 + $0x320] sm:$0xff]
      %v1526 = vld [vmem:[#allocation2 + $0x328] sm:$0xff]
      %v1527 = vld [vmem:[#allocation2 + $0x330] sm:$0xff]
      %v1528 = vld [vmem:[#allocation2 + $0x338] sm:$0xff]
      %v1529 = vld [vmem:[#allocation2 + $0x340] sm:$0xff]
      %v1530 = vld [vmem:[#allocation2 + $0x348] sm:$0xff]
      %v1531 = vld [vmem:[#allocation2 + $0x350] sm:$0xff]
      %v1532 = vld [vmem:[#allocation2 + $0x358] sm:$0xff]
      %v1533 = vld [vmem:[#allocation2 + $0x360] sm:$0xff]
      %v1534 = vld [vmem:[#allocation2 + $0x368] sm:$0xff]
      %v1535 = vld [vmem:[#allocation2 + $0x370] sm:$0xff]
      %v1536 = vld [vmem:[#allocation2 + $0x378] sm:$0xff]
      %v1537 = vld [vmem:[#allocation2 + $0x380] sm:$0xff]
      %v1538 = vld [vmem:[#allocation2 + $0x388] sm:$0xff]
      %v1539 = vld [vmem:[#allocation2 + $0x390] sm:$0xff]
      %v1540 = vld [vmem:[#allocation2 + $0x398] sm:$0xff]
      %v1541 = vld [vmem:[#allocation2 + $0x3a0] sm:$0xff]
      %v1542 = vld [vmem:[#allocation2 + $0x3a8] sm:$0xff]
      %v1543 = vld [vmem:[#allocation2 + $0x3b0] sm:$0xff]
      %v1544 = vld [vmem:[#allocation2 + $0x3b8] sm:$0xff]
      %v1545 = vld [vmem:[#allocation2 + $0x3c0] sm:$0xff]
      %v1546 = vld [vmem:[#allocation2 + $0x3c8] sm:$0xff]
      %v1547 = vld [vmem:[#allocation2 + $0x3d0] sm:$0xff]
      %v1548 = vld [vmem:[#allocation2 + $0x3d8] sm:$0xff]
      %v1549 = vld [vmem:[#allocation2 + $0x3e0] sm:$0xff]
      %v1550 = vld [vmem:[#allocation2 + $0x3e8] sm:$0xff]
      %v1551 = vld [vmem:[#allocation2 + $0x3f0] sm:$0xff]
      %v1552 = vld [vmem:[#allocation2 + $0x3f8] sm:$0xff]
      %v1553 = vld [vmem:[#allocation2 + $0x400] sm:$0xff]
      %v1554 = vld [vmem:[#allocation2 + $0x408] sm:$0xff]
      %v1555 = vld [vmem:[#allocation2 + $0x410] sm:$0xff]
      %v1556 = vld [vmem:[#allocation2 + $0x418] sm:$0xff]
      %v1557 = vld [vmem:[#allocation2 + $0x420] sm:$0xff]
      %v1558 = vld [vmem:[#allocation2 + $0x428] sm:$0xff]
      %v1559 = vld [vmem:[#allocation2 + $0x430] sm:$0xff]
      %1561 = vset.pattern.permute.xlu0 0
      %1562 = vperm.xlu0 %1561, %v285
      %v1563 = vpop.permute.xlu0 %1562
      %1566 = vset.pattern.permute.xlu0 0
      %1567 = vperm.xlu0 %1566, %v286
      %v1568 = vpop.permute.xlu0 %1567
      %1571 = vset.pattern.permute.xlu0 0
      %1572 = vperm.xlu0 %1571, %v287
      %v1573 = vpop.permute.xlu0 %1572
      %1576 = vset.pattern.permute.xlu0 0
      %1577 = vperm.xlu0 %1576, %v288
      %v1578 = vpop.permute.xlu0 %1577
      %1581 = vset.pattern.permute.xlu0 0
      %1582 = vperm.xlu0 %1581, %v289
      %v1583 = vpop.permute.xlu0 %1582
      %1586 = vset.pattern.permute.xlu0 0
      %1587 = vperm.xlu0 %1586, %v290
      %v1588 = vpop.permute.xlu0 %1587
      %1591 = vset.pattern.permute.xlu0 0
      %1592 = vperm.xlu0 %1591, %v291
      %v1593 = vpop.permute.xlu0 %1592
      %1596 = vset.pattern.permute.xlu0 0
      %1597 = vperm.xlu0 %1596, %v292
      %v1598 = vpop.permute.xlu0 %1597
      %1601 = vset.pattern.permute.xlu0 0
      %1602 = vperm.xlu0 %1601, %v293
      %v1603 = vpop.permute.xlu0 %1602
      %1606 = vset.pattern.permute.xlu0 0
      %1607 = vperm.xlu0 %1606, %v294
      %v1608 = vpop.permute.xlu0 %1607
      %1611 = vset.pattern.permute.xlu0 0
      %1612 = vperm.xlu0 %1611, %v295
      %v1613 = vpop.permute.xlu0 %1612
      %1616 = vset.pattern.permute.xlu0 0
      %1617 = vperm.xlu0 %1616, %v296
      %v1618 = vpop.permute.xlu0 %1617
      %1621 = vset.pattern.permute.xlu0 0
      %1622 = vperm.xlu0 %1621, %v297
      %v1623 = vpop.permute.xlu0 %1622
      %1626 = vset.pattern.permute.xlu0 0
      %1627 = vperm.xlu0 %1626, %v298
      %v1628 = vpop.permute.xlu0 %1627
      %1631 = vset.pattern.permute.xlu0 0
      %1632 = vperm.xlu0 %1631, %v299
      %v1633 = vpop.permute.xlu0 %1632
      %1636 = vset.pattern.permute.xlu0 0
      %1637 = vperm.xlu0 %1636, %v300
      %v1638 = vpop.permute.xlu0 %1637
      %v1641 = vsel %vm701, %v1379, 0
      %v1644 = vsel %vm701, %v1382, 0
      %v1647 = vsel %vm701, %v1385, 0
      %v1650 = vsel %vm701, %v1388, 0
      %v1653 = vsel %vm701, %v1391, 0
      %v1656 = vsel %vm701, %v1394, 0
      %v1659 = vsel %vm701, %v1397, 0
      %v1662 = vsel %vm701, %v1400, 0
      %v1665 = vsel %vm701, %v1403, 0
      %v1668 = vsel %vm701, %v1406, 0
      %v1671 = vsel %vm701, %v1409, 0
      %v1674 = vsel %vm701, %v1412, 0
      %v1677 = vsel %vm701, %v1415, 0
      %v1680 = vsel %vm701, %v1418, 0
      %v1683 = vsel %vm701, %v1421, 0
      %v1686 = vsel %vm701, %v1424, 0
      %1688 = vmatprep.subr.mxu0 %v1426
      %1689 = vmatpush1.msra.mxu0 %v1425
      %1690 = vmatprep.subr.mxu0 %v1429
      %1691 = vmatpush1.msra.mxu0 %v1428
      %1692 = vmatprep.subr.mxu0 %v1432
      %1693 = vmatpush1.msra.mxu0 %v1431
      %1694 = vmatprep.subr.mxu0 %v1435
      %1695 = vmatpush1.msra.mxu0 %v1434
      %1696 = vmatprep.subr.mxu0 %v1438
      %1697 = vmatpush1.msra.mxu0 %v1437
      %1698 = vmatprep.subr.mxu0 %v1441
      %1699 = vmatpush1.msra.mxu0 %v1440
      %1700 = vmatprep.subr.mxu0 %v1444
      %1701 = vmatpush1.msra.mxu0 %v1443
      %1702 = vmatprep.subr.mxu0 %v1447
      %1703 = vmatpush1.msra.mxu0 %v1446
      %1704 = vmatprep.subr.mxu0 %v1450
      %1705 = vmatpush1.msra.mxu0 %v1449
      %1706 = vmatprep.subr.mxu0 %v1453
      %1707 = vmatpush1.msra.mxu0 %v1452
      %1708 = vmatprep.subr.mxu0 %v1456
      %1709 = vmatpush1.msra.mxu0 %v1455
      %1710 = vmatprep.subr.mxu0 %v1459
      %1711 = vmatpush1.msra.mxu0 %v1458
      %1712 = vmatprep.subr.mxu0 %v1462
      %1713 = vmatpush1.msra.mxu0 %v1461
      %1714 = vmatprep.subr.mxu0 %v1465
      %1715 = vmatpush1.msra.mxu0 %v1464
      %1716 = vmatprep.subr.mxu0 %v1468
      %1717 = vmatpush1.msra.mxu0 %v1467
      %1718 = vmatprep.subr.mxu0 %v1471
      %1719 = vmatpush1.msra.mxu0 %v1470
      %1720 = vmatprep.subr.mxu0 %v1474
      %1721 = vmatpush1.msra.mxu0 %v1473
      %1722 = vmatprep.subr.mxu0 %v1477
      %1723 = vmatpush1.msra.mxu0 %v1476
      %1724 = vmatprep.subr.mxu0 %v1480
      %1725 = vmatpush1.msra.mxu0 %v1479
      %1726 = vmatprep.subr.mxu0 %v1483
      %1727 = vmatpush1.msra.mxu0 %v1482
      %1728 = vmatprep.subr.mxu0 %v1486
      %1729 = vmatpush1.msra.mxu0 %v1485
      %1730 = vmatprep.subr.mxu0 %v1489
      %1731 = vmatpush1.msra.mxu0 %v1488
      %1732 = vmatprep.subr.mxu0 %v1492
      %1733 = vmatpush1.msra.mxu0 %v1491
      %1734 = vmatprep.subr.mxu0 %v1495
      %1735 = vmatpush1.msra.mxu0 %v1494
      %1736 = vmatprep.subr.mxu0 %v1498
      %1737 = vmatpush1.msra.mxu0 %v1497
      %1738 = vmatprep.subr.mxu0 %v1501
      %1739 = vmatpush1.msra.mxu0 %v1500
      %1740 = vmatprep.subr.mxu0 %v1504
      %1741 = vmatpush1.msra.mxu0 %v1503
      %1742 = vmatprep.subr.mxu0 %v1507
      %1743 = vmatpush1.msra.mxu0 %v1506
      %1744 = vmatprep.subr.mxu0 %v1510
      %1745 = vmatpush1.msra.mxu0 %v1509
      %1746 = vmatprep.subr.mxu0 %v1513
      %1747 = vmatpush1.msra.mxu0 %v1512
      %1748 = vmatprep.subr.mxu0 %v1516
      %1749 = vmatpush1.msra.mxu0 %v1515
      %1750 = vmatprep.subr.mxu0 %v1519
      %1751 = vmatpush1.msra.mxu0 %v1518
      %1752 = vmatprep.mubr.f32.mxu0 %v1378
      %1753 = vmatmul.mubr.f32.gmra.mrb[0].mxu0 %v1377
      %v1754 = vpop.f32.mrb[0].mxu0
      %v1755 = vadd.f32 %v1563, %v1754
      %v1756 = vpop.f32.mrb[0].mxu0
      %v1757 = vadd.f32 %v1563, %v1756
      %1758 = vmatprep.mubr.f32.mxu0 %v1381
      %1759 = vmatmul.mubr.f32.gmra.mrb[0].mxu0 %v1380
      %v1760 = vpop.f32.mrb[0].mxu0
      %v1761 = vadd.f32 %v1568, %v1760
      %v1762 = vpop.f32.mrb[0].mxu0
      %v1763 = vadd.f32 %v1568, %v1762
      %1764 = vmatprep.mubr.f32.mxu0 %v1384
      %1765 = vmatmul.mubr.f32.gmra.mrb[0].mxu0 %v1383
      %v1766 = vpop.f32.mrb[0].mxu0
      %v1767 = vadd.f32 %v1573, %v1766
      %v1768 = vpop.f32.mrb[0].mxu0
      %v1769 = vadd.f32 %v1573, %v1768
      %1770 = vmatprep.mubr.f32.mxu0 %v1387
      %1771 = vmatmul.mubr.f32.gmra.mrb[0].mxu0 %v1386
      %v1772 = vpop.f32.mrb[0].mxu0
      %v1773 = vadd.f32 %v1578, %v1772
      %v1774 = vpop.f32.mrb[0].mxu0
      %v1775 = vadd.f32 %v1578, %v1774
      %1776 = vmatprep.mubr.f32.mxu0 %v1390
      %1777 = vmatmul.mubr.f32.gmra.mrb[0].mxu0 %v1389
      %v1778 = vpop.f32.mrb[0].mxu0
      %v1779 = vadd.f32 %v1583, %v1778
      %v1780 = vpop.f32.mrb[0].mxu0
      %v1781 = vadd.f32 %v1583, %v1780
      %1782 = vmatprep.mubr.f32.mxu0 %v1393
      %1783 = vmatmul.mubr.f32.gmra.mrb[0].mxu0 %v1392
      %v1784 = vpop.f32.mrb[0].mxu0
      %v1785 = vadd.f32 %v1588, %v1784
      %v1786 = vpop.f32.mrb[0].mxu0
      %v1787 = vadd.f32 %v1588, %v1786
      %1788 = vmatprep.mubr.f32.mxu0 %v1396
      %1789 = vmatmul.mubr.f32.gmra.mrb[0].mxu0 %v1395
      %v1790 = vpop.f32.mrb[0].mxu0
      %v1791 = vadd.f32 %v1593, %v1790
      %v1792 = vpop.f32.mrb[0].mxu0
      %v1793 = vadd.f32 %v1593, %v1792
      %1794 = vmatprep.mubr.f32.mxu0 %v1399
      %1795 = vmatmul.mubr.f32.gmra.mrb[0].mxu0 %v1398
      %v1796 = vpop.f32.mrb[0].mxu0
      %v1797 = vadd.f32 %v1598, %v1796
      %v1798 = vpop.f32.mrb[0].mxu0
      %v1799 = vadd.f32 %v1598, %v1798
      %1800 = vmatprep.mubr.f32.mxu0 %v1402
      %1801 = vmatmul.mubr.f32.gmra.mrb[0].mxu0 %v1401
      %v1802 = vpop.f32.mrb[0].mxu0
      %v1803 = vadd.f32 %v1603, %v1802
      %v1804 = vpop.f32.mrb[0].mxu0
      %v1805 = vadd.f32 %v1603, %v1804
      %1806 = vmatprep.mubr.f32.mxu0 %v1405
      %1807 = vmatmul.mubr.f32.gmra.mrb[0].mxu0 %v1404
      %v1808 = vpop.f32.mrb[0].mxu0
      %v1809 = vadd.f32 %v1608, %v1808
      %v1810 = vpop.f32.mrb[0].mxu0
      %v1811 = vadd.f32 %v1608, %v1810
      %1812 = vmatprep.mubr.f32.mxu0 %v1408
      %1813 = vmatmul.mubr.f32.gmra.mrb[0].mxu0 %v1407
      %v1814 = vpop.f32.mrb[0].mxu0
      %v1815 = vadd.f32 %v1613, %v1814
      %v1816 = vpop.f32.mrb[0].mxu0
      %v1817 = vadd.f32 %v1613, %v1816
      %1818 = vmatprep.mubr.f32.mxu0 %v1411
      %1819 = vmatmul.mubr.f32.gmra.mrb[0].mxu0 %v1410
      %v1820 = vpop.f32.mrb[0].mxu0
      %v1821 = vadd.f32 %v1618, %v1820
      %v1822 = vpop.f32.mrb[0].mxu0
      %v1823 = vadd.f32 %v1618, %v1822
      %1824 = vmatprep.mubr.f32.mxu0 %v1414
      %1825 = vmatmul.mubr.f32.gmra.mrb[0].mxu0 %v1413
      %v1826 = vpop.f32.mrb[0].mxu0
      %v1827 = vadd.f32 %v1623, %v1826
      %v1828 = vpop.f32.mrb[0].mxu0
      %v1829 = vadd.f32 %v1623, %v1828
      %1830 = vmatprep.mubr.f32.mxu0 %v1417
      %1831 = vmatmul.mubr.f32.gmra.mrb[0].mxu0 %v1416
      %v1832 = vpop.f32.mrb[0].mxu0
      %v1833 = vadd.f32 %v1628, %v1832
      %v1834 = vpop.f32.mrb[0].mxu0
      %v1835 = vadd.f32 %v1628, %v1834
      %1836 = vmatprep.mubr.f32.mxu0 %v1420
      %1837 = vmatmul.mubr.f32.gmra.mrb[0].mxu0 %v1419
      %v1838 = vpop.f32.mrb[0].mxu0
      %v1839 = vadd.f32 %v1633, %v1838
      %v1840 = vpop.f32.mrb[0].mxu0
      %v1841 = vadd.f32 %v1633, %v1840
      %1842 = vmatprep.mubr.f32.mxu0 %v1423
      %1843 = vmatmul.mubr.f32.gmra.mrb[0].mxu0 %v1422
      %v1844 = vpop.f32.mrb[0].mxu0
      %v1845 = vadd.f32 %v1638, %v1844
      %v1846 = vpop.f32.mrb[0].mxu0
      %v1847 = vadd.f32 %v1638, %v1846
      %1848 = vdwg.mxu0
      %1849 = vmatprep.subr.mxu0 %v1522
      %1850 = vmatpush1.msra.mxu0 %v1521
      %1851 = vmatprep.subr.mxu0 %v1525
      %1852 = vmatpush1.msra.mxu0 %v1524
      %1853 = vmatprep.subr.mxu0 %v1528
      %1854 = vmatpush1.msra.mxu0 %v1527
      %1855 = vmatprep.subr.mxu0 %v1531
      %1856 = vmatpush1.msra.mxu0 %v1530
      %1857 = vmatprep.subr.mxu0 %v1534
      %1858 = vmatpush1.msra.mxu0 %v1533
      %1859 = vmatprep.subr.mxu0 %v1537
      %1860 = vmatpush1.msra.mxu0 %v1536
      %1861 = vmatprep.subr.mxu0 %v1540
      %1862 = vmatpush1.msra.mxu0 %v1539
      %1863 = vmatprep.subr.mxu0 %v1543
      %1864 = vmatpush1.msra.mxu0 %v1542
      %1865 = vmatprep.subr.mxu0 %v1546
      %1866 = vmatpush1.msra.mxu0 %v1545
      %1867 = vmatprep.subr.mxu0 %v1549
      %1868 = vmatpush1.msra.mxu0 %v1548
      %1869 = vmatprep.subr.mxu0 %v1552
      %1870 = vmatpush1.msra.mxu0 %v1551
      %1871 = vmatprep.subr.mxu0 %v1555
      %1872 = vmatpush1.msra.mxu0 %v1554
      %1873 = vmatprep.subr.mxu0 %v1558
      %1874 = vmatpush1.msra.mxu0 %v1557
      %1875 = vmatprep.subr.mxu0 0.0
      %1876 = vmatpush1.msra.mxu0 0.0
      %1877 = vmatprep.subr.mxu0 0.0
      %1878 = vmatpush1.msra.mxu0 0.0
      %1879 = vmatprep.subr.mxu0 0.0
      %1880 = vmatpush1.msra.mxu0 0.0
      %1881 = vmatprep.subr.mxu0 0.0
      %1882 = vmatpush1.msra.mxu0 0.0
      %1883 = vmatprep.subr.mxu0 0.0
      %1884 = vmatpush1.msra.mxu0 0.0
      %1885 = vmatprep.subr.mxu0 0.0
      %1886 = vmatpush1.msra.mxu0 0.0
      %1887 = vmatprep.subr.mxu0 0.0
      %1888 = vmatpush1.msra.mxu0 0.0
      %1889 = vmatprep.subr.mxu0 0.0
      %1890 = vmatpush1.msra.mxu0 0.0
      %1891 = vmatprep.subr.mxu0 0.0
      %1892 = vmatpush1.msra.mxu0 0.0
      %1893 = vmatprep.subr.mxu0 0.0
      %1894 = vmatpush1.msra.mxu0 0.0
      %1895 = vmatprep.subr.mxu0 0.0
      %1896 = vmatpush1.msra.mxu0 0.0
      %1897 = vmatprep.subr.mxu0 0.0
      %1898 = vmatpush1.msra.mxu0 0.0
      %1899 = vmatprep.subr.mxu0 0.0
      %1900 = vmatpush1.msra.mxu0 0.0
      %1901 = vmatprep.subr.mxu0 0.0
      %1902 = vmatpush1.msra.mxu0 0.0
      %1903 = vmatprep.subr.mxu0 0.0
      %1904 = vmatpush1.msra.mxu0 0.0
      %1905 = vmatprep.subr.mxu0 0.0
      %1906 = vmatpush1.msra.mxu0 0.0
      %1907 = vmatprep.subr.mxu0 0.0
      %1908 = vmatpush1.msra.mxu0 0.0
      %1909 = vmatprep.subr.mxu0 0.0
      %1910 = vmatpush1.msra.mxu0 0.0
      %1911 = vmatprep.subr.mxu0 0.0
      %1912 = vmatpush1.msra.mxu0 0.0
      %1913 = vmatprep.mubr.f32.mxu0 0.0
      %1914 = vmatmul.mubr.f32.gmra.mrb[0].mxu0 %v1641
      %v1915 = vpop.f32.mrb[0].mxu0
      %v1916 = vadd.f32 %v1755, %v1915
      %v1917 = vpop.f32.mrb[0].mxu0
      %v1918 = vadd.f32 %v1757, %v1917
      %1919 = vmatprep.mubr.f32.mxu0 0.0
      %1920 = vmatmul.mubr.f32.gmra.mrb[0].mxu0 %v1644
      %v1921 = vpop.f32.mrb[0].mxu0
      %v1922 = vadd.f32 %v1761, %v1921
      %v1923 = vpop.f32.mrb[0].mxu0
      %v1924 = vadd.f32 %v1763, %v1923
      %1925 = vmatprep.mubr.f32.mxu0 0.0
      %1926 = vmatmul.mubr.f32.gmra.mrb[0].mxu0 %v1647
      %v1927 = vpop.f32.mrb[0].mxu0
      %v1928 = vadd.f32 %v1767, %v1927
      %v1929 = vpop.f32.mrb[0].mxu0
      %v1930 = vadd.f32 %v1769, %v1929
      %1931 = vmatprep.mubr.f32.mxu0 0.0
      %1932 = vmatmul.mubr.f32.gmra.mrb[0].mxu0 %v1650
      %v1933 = vpop.f32.mrb[0].mxu0
      %v1934 = vadd.f32 %v1773, %v1933
      %v1935 = vpop.f32.mrb[0].mxu0
      %v1936 = vadd.f32 %v1775, %v1935
      %1937 = vmatprep.mubr.f32.mxu0 0.0
      %1938 = vmatmul.mubr.f32.gmra.mrb[0].mxu0 %v1653
      %v1939 = vpop.f32.mrb[0].mxu0
      %v1940 = vadd.f32 %v1779, %v1939
      %v1941 = vpop.f32.mrb[0].mxu0
      %v1942 = vadd.f32 %v1781, %v1941
      %1943 = vmatprep.mubr.f32.mxu0 0.0
      %1944 = vmatmul.mubr.f32.gmra.mrb[0].mxu0 %v1656
      %v1945 = vpop.f32.mrb[0].mxu0
      %v1946 = vadd.f32 %v1785, %v1945
      %v1947 = vpop.f32.mrb[0].mxu0
      %v1948 = vadd.f32 %v1787, %v1947
      %1949 = vmatprep.mubr.f32.mxu0 0.0
      %1950 = vmatmul.mubr.f32.gmra.mrb[0].mxu0 %v1659
      %v1951 = vpop.f32.mrb[0].mxu0
      %v1952 = vadd.f32 %v1791, %v1951
      %v1953 = vpop.f32.mrb[0].mxu0
      %v1954 = vadd.f32 %v1793, %v1953
      %1955 = vmatprep.mubr.f32.mxu0 0.0
      %1956 = vmatmul.mubr.f32.gmra.mrb[0].mxu0 %v1662
      %v1957 = vpop.f32.mrb[0].mxu0
      %v1958 = vadd.f32 %v1797, %v1957
      %v1959 = vpop.f32.mrb[0].mxu0
      %v1960 = vadd.f32 %v1799, %v1959
      %1961 = vmatprep.mubr.f32.mxu0 0.0
      %1962 = vmatmul.mubr.f32.gmra.mrb[0].mxu0 %v1665
      %v1963 = vpop.f32.mrb[0].mxu0
      %v1964 = vadd.f32 %v1803, %v1963
      %v1965 = vpop.f32.mrb[0].mxu0
      %v1966 = vadd.f32 %v1805, %v1965
      %1967 = vmatprep.mubr.f32.mxu0 0.0
      %1968 = vmatmul.mubr.f32.gmra.mrb[0].mxu0 %v1668
      %v1969 = vpop.f32.mrb[0].mxu0
      %v1970 = vadd.f32 %v1809, %v1969
      %v1971 = vpop.f32.mrb[0].mxu0
      %v1972 = vadd.f32 %v1811, %v1971
      %1973 = vmatprep.mubr.f32.mxu0 0.0
      %1974 = vmatmul.mubr.f32.gmra.mrb[0].mxu0 %v1671
      %v1975 = vpop.f32.mrb[0].mxu0
      %v1976 = vadd.f32 %v1815, %v1975
      %v1977 = vpop.f32.mrb[0].mxu0
      %v1978 = vadd.f32 %v1817, %v1977
      %1979 = vmatprep.mubr.f32.mxu0 0.0
      %1980 = vmatmul.mubr.f32.gmra.mrb[0].mxu0 %v1674
      %v1981 = vpop.f32.mrb[0].mxu0
      %v1982 = vadd.f32 %v1821, %v1981
      %v1983 = vpop.f32.mrb[0].mxu0
      %v1984 = vadd.f32 %v1823, %v1983
      %1985 = vmatprep.mubr.f32.mxu0 0.0
      %1986 = vmatmul.mubr.f32.gmra.mrb[0].mxu0 %v1677
      %v1987 = vpop.f32.mrb[0].mxu0
      %v1988 = vadd.f32 %v1827, %v1987
      %v1989 = vpop.f32.mrb[0].mxu0
      %v1990 = vadd.f32 %v1829, %v1989
      %1991 = vmatprep.mubr.f32.mxu0 0.0
      %1992 = vmatmul.mubr.f32.gmra.mrb[0].mxu0 %v1680
      %v1993 = vpop.f32.mrb[0].mxu0
      %v1994 = vadd.f32 %v1833, %v1993
      %v1995 = vpop.f32.mrb[0].mxu0
      %v1996 = vadd.f32 %v1835, %v1995
      %1997 = vmatprep.mubr.f32.mxu0 0.0
      %1998 = vmatmul.mubr.f32.gmra.mrb[0].mxu0 %v1683
      %v1999 = vpop.f32.mrb[0].mxu0
      %v2000 = vadd.f32 %v1839, %v1999
      %v2001 = vpop.f32.mrb[0].mxu0
      %v2002 = vadd.f32 %v1841, %v2001
      %2003 = vmatprep.mubr.f32.mxu0 0.0
      %2004 = vmatmul.mubr.f32.gmra.mrb[0].mxu0 %v1686
      %v2005 = vpop.f32.mrb[0].mxu0
      %v2006 = vadd.f32 %v1845, %v2005
      %v2007 = vpop.f32.mrb[0].mxu0
      %v2008 = vadd.f32 %v1847, %v2007
      %2009 = vdwg.mxu0
      %2010 = vmatprep.subr.mxu0 0.0
      %2011 = vmatpush1.msra.mxu0 %v1427
      %2012 = vmatprep.subr.mxu0 0.0
      %2013 = vmatpush1.msra.mxu0 %v1430
      %2014 = vmatprep.subr.mxu0 0.0
      %2015 = vmatpush1.msra.mxu0 %v1433
      %2016 = vmatprep.subr.mxu0 0.0
      %2017 = vmatpush1.msra.mxu0 %v1436
      %2018 = vmatprep.subr.mxu0 0.0
      %2019 = vmatpush1.msra.mxu0 %v1439
      %2020 = vmatprep.subr.mxu0 0.0
      %2021 = vmatpush1.msra.mxu0 %v1442
      %2022 = vmatprep.subr.mxu0 0.0
      %2023 = vmatpush1.msra.mxu0 %v1445
      %2024 = vmatprep.subr.mxu0 0.0
      %2025 = vmatpush1.msra.mxu0 %v1448
      %2026 = vmatprep.subr.mxu0 0.0
      %2027 = vmatpush1.msra.mxu0 %v1451
      %2028 = vmatprep.subr.mxu0 0.0
      %2029 = vmatpush1.msra.mxu0 %v1454
      %2030 = vmatprep.subr.mxu0 0.0
      %2031 = vmatpush1.msra.mxu0 %v1457
      %2032 = vmatprep.subr.mxu0 0.0
      %2033 = vmatpush1.msra.mxu0 %v1460
      %2034 = vmatprep.subr.mxu0 0.0
      %2035 = vmatpush1.msra.mxu0 %v1463
      %2036 = vmatprep.subr.mxu0 0.0
      %2037 = vmatpush1.msra.mxu0 %v1466
      %2038 = vmatprep.subr.mxu0 0.0
      %2039 = vmatpush1.msra.mxu0 %v1469
      %2040 = vmatprep.subr.mxu0 0.0
      %2041 = vmatpush1.msra.mxu0 %v1472
      %2042 = vmatprep.subr.mxu0 0.0
      %2043 = vmatpush1.msra.mxu0 %v1475
      %2044 = vmatprep.subr.mxu0 0.0
      %2045 = vmatpush1.msra.mxu0 %v1478
      %2046 = vmatprep.subr.mxu0 0.0
      %2047 = vmatpush1.msra.mxu0 %v1481
      %2048 = vmatprep.subr.mxu0 0.0
      %2049 = vmatpush1.msra.mxu0 %v1484
      %2050 = vmatprep.subr.mxu0 0.0
      %2051 = vmatpush1.msra.mxu0 %v1487
      %2052 = vmatprep.subr.mxu0 0.0
      %2053 = vmatpush1.msra.mxu0 %v1490
      %2054 = vmatprep.subr.mxu0 0.0
      %2055 = vmatpush1.msra.mxu0 %v1493
      %2056 = vmatprep.subr.mxu0 0.0
      %2057 = vmatpush1.msra.mxu0 %v1496
      %2058 = vmatprep.subr.mxu0 0.0
      %2059 = vmatpush1.msra.mxu0 %v1499
      %2060 = vmatprep.subr.mxu0 0.0
      %2061 = vmatpush1.msra.mxu0 %v1502
      %2062 = vmatprep.subr.mxu0 0.0
      %2063 = vmatpush1.msra.mxu0 %v1505
      %2064 = vmatprep.subr.mxu0 0.0
      %2065 = vmatpush1.msra.mxu0 %v1508
      %2066 = vmatprep.subr.mxu0 0.0
      %2067 = vmatpush1.msra.mxu0 %v1511
      %2068 = vmatprep.subr.mxu0 0.0
      %2069 = vmatpush1.msra.mxu0 %v1514
      %2070 = vmatprep.subr.mxu0 0.0
      %2071 = vmatpush1.msra.mxu0 %v1517
      %2072 = vmatprep.subr.mxu0 0.0
      %2073 = vmatpush1.msra.mxu0 %v1520
      %2074 = vmatprep.mubr.f32.mxu0 %v1378
      %2075 = vmatmul.mubr.f32.gmra.mrb[0].mxu0 %v1377
      %v2076 = vpop.f32.mrb[0].mxu0
      %v2077 = vadd.f32 %v1563, %v2076
      %v2078 = vpop.f32.mrb[0].mxu0
      %2079 = vmatprep.mubr.f32.mxu0 %v1381
      %2080 = vmatmul.mubr.f32.gmra.mrb[0].mxu0 %v1380
      %v2081 = vpop.f32.mrb[0].mxu0
      %v2082 = vadd.f32 %v1568, %v2081
      %v2083 = vpop.f32.mrb[0].mxu0
      %2084 = vmatprep.mubr.f32.mxu0 %v1384
      %2085 = vmatmul.mubr.f32.gmra.mrb[0].mxu0 %v1383
      %v2086 = vpop.f32.mrb[0].mxu0
      %v2087 = vadd.f32 %v1573, %v2086
      %v2088 = vpop.f32.mrb[0].mxu0
      %2089 = vmatprep.mubr.f32.mxu0 %v1387
      %2090 = vmatmul.mubr.f32.gmra.mrb[0].mxu0 %v1386
      %v2091 = vpop.f32.mrb[0].mxu0
      %v2092 = vadd.f32 %v1578, %v2091
      %v2093 = vpop.f32.mrb[0].mxu0
      %2094 = vmatprep.mubr.f32.mxu0 %v1390
      %2095 = vmatmul.mubr.f32.gmra.mrb[0].mxu0 %v1389
      %v2096 = vpop.f32.mrb[0].mxu0
      %v2097 = vadd.f32 %v1583, %v2096
      %v2098 = vpop.f32.mrb[0].mxu0
      %2099 = vmatprep.mubr.f32.mxu0 %v1393
      %2100 = vmatmul.mubr.f32.gmra.mrb[0].mxu0 %v1392
      %v2101 = vpop.f32.mrb[0].mxu0
      %v2102 = vadd.f32 %v1588, %v2101
      %v2103 = vpop.f32.mrb[0].mxu0
      %2104 = vmatprep.mubr.f32.mxu0 %v1396
      %2105 = vmatmul.mubr.f32.gmra.mrb[0].mxu0 %v1395
      %v2106 = vpop.f32.mrb[0].mxu0
      %v2107 = vadd.f32 %v1593, %v2106
      %v2108 = vpop.f32.mrb[0].mxu0
      %2109 = vmatprep.mubr.f32.mxu0 %v1399
      %2110 = vmatmul.mubr.f32.gmra.mrb[0].mxu0 %v1398
      %v2111 = vpop.f32.mrb[0].mxu0
      %v2112 = vadd.f32 %v1598, %v2111
      %v2113 = vpop.f32.mrb[0].mxu0
      %2114 = vmatprep.mubr.f32.mxu0 %v1402
      %2115 = vmatmul.mubr.f32.gmra.mrb[0].mxu0 %v1401
      %v2116 = vpop.f32.mrb[0].mxu0
      %v2117 = vadd.f32 %v1603, %v2116
      %v2118 = vpop.f32.mrb[0].mxu0
      %2119 = vmatprep.mubr.f32.mxu0 %v1405
      %2120 = vmatmul.mubr.f32.gmra.mrb[0].mxu0 %v1404
      %v2121 = vpop.f32.mrb[0].mxu0
      %v2122 = vadd.f32 %v1608, %v2121
      %v2123 = vpop.f32.mrb[0].mxu0
      %2124 = vmatprep.mubr.f32.mxu0 %v1408
      %2125 = vmatmul.mubr.f32.gmra.mrb[0].mxu0 %v1407
      %v2126 = vpop.f32.mrb[0].mxu0
      %v2127 = vadd.f32 %v1613, %v2126
      %v2128 = vpop.f32.mrb[0].mxu0
      %2129 = vmatprep.mubr.f32.mxu0 %v1411
      %2130 = vmatmul.mubr.f32.gmra.mrb[0].mxu0 %v1410
      %v2131 = vpop.f32.mrb[0].mxu0
      %v2132 = vadd.f32 %v1618, %v2131
      %v2133 = vpop.f32.mrb[0].mxu0
      %2134 = vmatprep.mubr.f32.mxu0 %v1414
      %2135 = vmatmul.mubr.f32.gmra.mrb[0].mxu0 %v1413
      %v2136 = vpop.f32.mrb[0].mxu0
      %v2137 = vadd.f32 %v1623, %v2136
      %v2138 = vpop.f32.mrb[0].mxu0
      %2139 = vmatprep.mubr.f32.mxu0 %v1417
      %2140 = vmatmul.mubr.f32.gmra.mrb[0].mxu0 %v1416
      %v2141 = vpop.f32.mrb[0].mxu0
      %v2142 = vadd.f32 %v1628, %v2141
      %v2143 = vpop.f32.mrb[0].mxu0
      %2144 = vmatprep.mubr.f32.mxu0 %v1420
      %2145 = vmatmul.mubr.f32.gmra.mrb[0].mxu0 %v1419
      %v2146 = vpop.f32.mrb[0].mxu0
      %v2147 = vadd.f32 %v1633, %v2146
      %v2148 = vpop.f32.mrb[0].mxu0
      %2149 = vmatprep.mubr.f32.mxu0 %v1423
      %2150 = vmatmul.mubr.f32.gmra.mrb[0].mxu0 %v1422
      %v2151 = vpop.f32.mrb[0].mxu0
      %v2152 = vadd.f32 %v1638, %v2151
      %v2153 = vpop.f32.mrb[0].mxu0
      %2154 = vdwg.mxu0
      %2155 = vmatprep.subr.mxu0 0.0
      %2156 = vmatpush1.msra.mxu0 %v1523
      %2157 = vmatprep.subr.mxu0 0.0
      %2158 = vmatpush1.msra.mxu0 %v1526
      %2159 = vmatprep.subr.mxu0 0.0
      %2160 = vmatpush1.msra.mxu0 %v1529
      %2161 = vmatprep.subr.mxu0 0.0
      %2162 = vmatpush1.msra.mxu0 %v1532
      %2163 = vmatprep.subr.mxu0 0.0
      %2164 = vmatpush1.msra.mxu0 %v1535
      %2165 = vmatprep.subr.mxu0 0.0
      %2166 = vmatpush1.msra.mxu0 %v1538
      %2167 = vmatprep.subr.mxu0 0.0
      %2168 = vmatpush1.msra.mxu0 %v1541
      %2169 = vmatprep.subr.mxu0 0.0
      %2170 = vmatpush1.msra.mxu0 %v1544
      %2171 = vmatprep.subr.mxu0 0.0
      %2172 = vmatpush1.msra.mxu0 %v1547
      %2173 = vmatprep.subr.mxu0 0.0
      %2174 = vmatpush1.msra.mxu0 %v1550
      %2175 = vmatprep.subr.mxu0 0.0
      %2176 = vmatpush1.msra.mxu0 %v1553
      %2177 = vmatprep.subr.mxu0 0.0
      %2178 = vmatpush1.msra.mxu0 %v1556
      %2179 = vmatprep.subr.mxu0 0.0
      %2180 = vmatpush1.msra.mxu0 %v1559
      %2181 = vmatprep.subr.mxu0 0.0
      %2182 = vmatpush1.msra.mxu0 0.0
      %2183 = vmatprep.subr.mxu0 0.0
      %2184 = vmatpush1.msra.mxu0 0.0
      %2185 = vmatprep.subr.mxu0 0.0
      %2186 = vmatpush1.msra.mxu0 0.0
      %2187 = vmatprep.subr.mxu0 0.0
      %2188 = vmatpush1.msra.mxu0 0.0
      %2189 = vmatprep.subr.mxu0 0.0
      %2190 = vmatpush1.msra.mxu0 0.0
      %2191 = vmatprep.subr.mxu0 0.0
      %2192 = vmatpush1.msra.mxu0 0.0
      %2193 = vmatprep.subr.mxu0 0.0
      %2194 = vmatpush1.msra.mxu0 0.0
      %2195 = vmatprep.subr.mxu0 0.0
      %2196 = vmatpush1.msra.mxu0 0.0
      %2197 = vmatprep.subr.mxu0 0.0
      %2198 = vmatpush1.msra.mxu0 0.0
      %2199 = vmatprep.subr.mxu0 0.0
      %2200 = vmatpush1.msra.mxu0 0.0
      %2201 = vmatprep.subr.mxu0 0.0
      %2202 = vmatpush1.msra.mxu0 0.0
      %2203 = vmatprep.subr.mxu0 0.0
      %2204 = vmatpush1.msra.mxu0 0.0
      %2205 = vmatprep.subr.mxu0 0.0
      %2206 = vmatpush1.msra.mxu0 0.0
      %2207 = vmatprep.subr.mxu0 0.0
      %2208 = vmatpush1.msra.mxu0 0.0
      %2209 = vmatprep.subr.mxu0 0.0
      %2210 = vmatpush1.msra.mxu0 0.0
      %2211 = vmatprep.subr.mxu0 0.0
      %2212 = vmatpush1.msra.mxu0 0.0
      %2213 = vmatprep.subr.mxu0 0.0
      %2214 = vmatpush1.msra.mxu0 0.0
      %2215 = vmatprep.subr.mxu0 0.0
      %2216 = vmatpush1.msra.mxu0 0.0
      %2217 = vmatprep.subr.mxu0 0.0
      %2218 = vmatpush1.msra.mxu0 0.0
      %2219 = vmatprep.mubr.f32.mxu0 0.0
      %2220 = vmatmul.mubr.f32.gmra.mrb[0].mxu0 %v1641
      %v2221 = vpop.f32.mrb[0].mxu0
      %v2222 = vadd.f32 %v2077, %v2221
      %v2223 = vpop.f32.mrb[0].mxu0
      %2224 = vmatprep.mubr.f32.mxu0 0.0
      %2225 = vmatmul.mubr.f32.gmra.mrb[0].mxu0 %v1644
      %v2226 = vpop.f32.mrb[0].mxu0
      %v2227 = vadd.f32 %v2082, %v2226
      %v2228 = vpop.f32.mrb[0].mxu0
      %2229 = vmatprep.mubr.f32.mxu0 0.0
      %2230 = vmatmul.mubr.f32.gmra.mrb[0].mxu0 %v1647
      %v2231 = vpop.f32.mrb[0].mxu0
      %v2232 = vadd.f32 %v2087, %v2231
      %v2233 = vpop.f32.mrb[0].mxu0
      %2234 = vmatprep.mubr.f32.mxu0 0.0
      %2235 = vmatmul.mubr.f32.gmra.mrb[0].mxu0 %v1650
      %v2236 = vpop.f32.mrb[0].mxu0
      %v2237 = vadd.f32 %v2092, %v2236
      %v2238 = vpop.f32.mrb[0].mxu0
      %2239 = vmatprep.mubr.f32.mxu0 0.0
      %2240 = vmatmul.mubr.f32.gmra.mrb[0].mxu0 %v1653
      %v2241 = vpop.f32.mrb[0].mxu0
      %v2242 = vadd.f32 %v2097, %v2241
      %v2243 = vpop.f32.mrb[0].mxu0
      %2244 = vmatprep.mubr.f32.mxu0 0.0
      %2245 = vmatmul.mubr.f32.gmra.mrb[0].mxu0 %v1656
      %v2246 = vpop.f32.mrb[0].mxu0
      %v2247 = vadd.f32 %v2102, %v2246
      %v2248 = vpop.f32.mrb[0].mxu0
      %2249 = vmatprep.mubr.f32.mxu0 0.0
      %2250 = vmatmul.mubr.f32.gmra.mrb[0].mxu0 %v1659
      %v2251 = vpop.f32.mrb[0].mxu0
      %v2252 = vadd.f32 %v2107, %v2251
      %v2253 = vpop.f32.mrb[0].mxu0
      %2254 = vmatprep.mubr.f32.mxu0 0.0
      %2255 = vmatmul.mubr.f32.gmra.mrb[0].mxu0 %v1662
      %v2256 = vpop.f32.mrb[0].mxu0
      %v2257 = vadd.f32 %v2112, %v2256
      %v2258 = vpop.f32.mrb[0].mxu0
      %2259 = vmatprep.mubr.f32.mxu0 0.0
      %2260 = vmatmul.mubr.f32.gmra.mrb[0].mxu0 %v1665
      %v2261 = vpop.f32.mrb[0].mxu0
      %v2262 = vadd.f32 %v2117, %v2261
      %v2263 = vpop.f32.mrb[0].mxu0
      %2264 = vmatprep.mubr.f32.mxu0 0.0
      %2265 = vmatmul.mubr.f32.gmra.mrb[0].mxu0 %v1668
      %v2266 = vpop.f32.mrb[0].mxu0
      %v2267 = vadd.f32 %v2122, %v2266
      %v2268 = vpop.f32.mrb[0].mxu0
      %2269 = vmatprep.mubr.f32.mxu0 0.0
      %2270 = vmatmul.mubr.f32.gmra.mrb[0].mxu0 %v1671
      %v2271 = vpop.f32.mrb[0].mxu0
      %v2272 = vadd.f32 %v2127, %v2271
      %v2273 = vpop.f32.mrb[0].mxu0
      %2274 = vmatprep.mubr.f32.mxu0 0.0
      %2275 = vmatmul.mubr.f32.gmra.mrb[0].mxu0 %v1674
      %v2276 = vpop.f32.mrb[0].mxu0
      %v2277 = vadd.f32 %v2132, %v2276
      %v2278 = vpop.f32.mrb[0].mxu0
      %2279 = vmatprep.mubr.f32.mxu0 0.0
      %2280 = vmatmul.mubr.f32.gmra.mrb[0].mxu0 %v1677
      %v2281 = vpop.f32.mrb[0].mxu0
      %v2282 = vadd.f32 %v2137, %v2281
      %v2283 = vpop.f32.mrb[0].mxu0
      %2284 = vmatprep.mubr.f32.mxu0 0.0
      %2285 = vmatmul.mubr.f32.gmra.mrb[0].mxu0 %v1680
      %v2286 = vpop.f32.mrb[0].mxu0
      %v2287 = vadd.f32 %v2142, %v2286
      %v2288 = vpop.f32.mrb[0].mxu0
      %2289 = vmatprep.mubr.f32.mxu0 0.0
      %2290 = vmatmul.mubr.f32.gmra.mrb[0].mxu0 %v1683
      %v2291 = vpop.f32.mrb[0].mxu0
      %v2292 = vadd.f32 %v2147, %v2291
      %v2293 = vpop.f32.mrb[0].mxu0
      %2294 = vmatprep.mubr.f32.mxu0 0.0
      %2295 = vmatmul.mubr.f32.gmra.mrb[0].mxu0 %v1686
      %v2296 = vpop.f32.mrb[0].mxu0
      %v2297 = vadd.f32 %v2152, %v2296
      %v2298 = vpop.f32.mrb[0].mxu0
      %2299 = vdwg.mxu0
      %v2300 = vld [vmem:[%s274] sm:$0xff]
      %v2301 = vld [vmem:[%s274 + $0x8] sm:$0xff]
      %v2302 = vld [vmem:[%s274 + $0x10] sm:$0xff]
      %v2303 = vld [vmem:[%s274 + $0x18] sm:$0xff]
      %v2304 = vld [vmem:[%s274 + $0x20] sm:$0xff]
      %v2305 = vld [vmem:[%s274 + $0x28] sm:$0xff]
      %v2306 = vld [vmem:[%s274 + $0x30] sm:$0xff]
      %v2307 = vld [vmem:[%s274 + $0x38] sm:$0xff]
      %v2308 = vld [vmem:[%s274 + $0x40] sm:$0xff]
      %v2309 = vld [vmem:[%s274 + $0x48] sm:$0xff]
      %v2310 = vld [vmem:[%s274 + $0x50] sm:$0xff]
      %v2311 = vld [vmem:[%s274 + $0x58] sm:$0xff]
      %v2312 = vmul.f32 %v301, %v2300
      %v2313 = vmul.f32 %v302, %v2301
      %v2314 = vmul.f32 %v303, %v2302
      %v2315 = vmul.f32 %v304, %v2303
      %v2316 = vmul.f32 %v305, %v2304
      %v2317 = vmul.f32 %v306, %v2305
      %v2318 = vmul.f32 %v307, %v2306
      %v2319 = vmul.f32 %v308, %v2307
      %v2320 = vmul.f32 %v309, %v2308
      %v2321 = vmul.f32 %v310, %v2309
      %v2322 = vmul.f32 %v311, %v2310
      %v2323 = vmul.f32 %v312, %v2311
      %v2324 = vadd.f32 %v1916, %v2312
      %v2325 = vadd.f32 %v1918, %v2313
      %v2326 = vadd.f32 %v2222, %v2314
      %v2327 = vadd.f32 %v1922, %v2315
      %v2328 = vadd.f32 %v1924, %v2316
      %v2329 = vadd.f32 %v2227, %v2317
      %v2330 = vadd.f32 %v1928, %v2318
      %v2331 = vadd.f32 %v1930, %v2319
      %v2332 = vadd.f32 %v2232, %v2320
      %v2333 = vadd.f32 %v1934, %v2321
      %v2334 = vadd.f32 %v1936, %v2322
      %v2335 = vadd.f32 %v2237, %v2323
      %v2336 = vxor.u32 %v2324, 2147483648
      %v2337 = vxor.u32 %v2325, 2147483648
      %v2338 = vxor.u32 %v2326, 2147483648
      %v2339 = vxor.u32 %v2327, 2147483648
      %v2340 = vxor.u32 %v2328, 2147483648
      %v2341 = vxor.u32 %v2329, 2147483648
      %v2342 = vxor.u32 %v2330, 2147483648
      %v2343 = vxor.u32 %v2331, 2147483648
      %v2344 = vxor.u32 %v2332, 2147483648
      %v2345 = vxor.u32 %v2333, 2147483648
      %v2346 = vxor.u32 %v2334, 2147483648
      %v2347 = vxor.u32 %v2335, 2147483648
      %v2348 = vmul.f32 %v2336, 1.442695
      %v2349 = vpow.pop %v2348
      %v2350 = vmul.f32 %v2337, 1.442695
      %v2351 = vpow.pop %v2350
      %v2352 = vmul.f32 %v2338, 1.442695
      %v2353 = vpow.pop %v2352
      %v2354 = vmul.f32 %v2339, 1.442695
      %v2355 = vpow.pop %v2354
      %v2356 = vmul.f32 %v2340, 1.442695
      %v2357 = vpow.pop %v2356
      %v2358 = vmul.f32 %v2341, 1.442695
      %v2359 = vpow.pop %v2358
      %v2360 = vmul.f32 %v2342, 1.442695
      %v2361 = vpow.pop %v2360
      %v2362 = vmul.f32 %v2343, 1.442695
      %v2363 = vpow.pop %v2362
      %v2364 = vmul.f32 %v2344, 1.442695
      %v2365 = vpow.pop %v2364
      %v2366 = vmul.f32 %v2345, 1.442695
      %v2367 = vpow.pop %v2366
      %v2368 = vmul.f32 %v2346, 1.442695
      %v2369 = vpow.pop %v2368
      %v2370 = vmul.f32 %v2347, 1.442695
      %v2371 = vpow.pop %v2370
      %v2372 = vadd.f32 %v2349, 1.0
      %v2373 = vadd.f32 %v2351, 1.0
      %v2374 = vadd.f32 %v2353, 1.0
      %v2375 = vadd.f32 %v2355, 1.0
      %v2376 = vadd.f32 %v2357, 1.0
      %v2377 = vadd.f32 %v2359, 1.0
      %v2378 = vadd.f32 %v2361, 1.0
      %v2379 = vadd.f32 %v2363, 1.0
      %v2380 = vadd.f32 %v2365, 1.0
      %v2381 = vadd.f32 %v2367, 1.0
      %v2382 = vadd.f32 %v2369, 1.0
      %v2383 = vadd.f32 %v2371, 1.0
      %v2384 = vrcp.pop %v2372
      %v2385 = vmul.f32 1.0, %v2384
      %v2386 = vrcp.pop %v2373
      %v2387 = vmul.f32 1.0, %v2386
      %v2388 = vrcp.pop %v2374
      %v2389 = vmul.f32 1.0, %v2388
      %v2390 = vrcp.pop %v2375
      %v2391 = vmul.f32 1.0, %v2390
      %v2392 = vrcp.pop %v2376
      %v2393 = vmul.f32 1.0, %v2392
      %v2394 = vrcp.pop %v2377
      %v2395 = vmul.f32 1.0, %v2394
      %v2396 = vrcp.pop %v2378
      %v2397 = vmul.f32 1.0, %v2396
      %v2398 = vrcp.pop %v2379
      %v2399 = vmul.f32 1.0, %v2398
      %v2400 = vrcp.pop %v2380
      %v2401 = vmul.f32 1.0, %v2400
      %v2402 = vrcp.pop %v2381
      %v2403 = vmul.f32 1.0, %v2402
      %v2404 = vrcp.pop %v2382
      %v2405 = vmul.f32 1.0, %v2404
      %v2406 = vrcp.pop %v2383
      %v2407 = vmul.f32 1.0, %v2406
      %v2408 = vmul.f32 %v314, %v2300
      %v2409 = vmul.f32 %v315, %v2301
      %v2410 = vmul.f32 %v316, %v2302
      %v2411 = vmul.f32 %v317, %v2303
      %v2412 = vmul.f32 %v318, %v2304
      %v2413 = vmul.f32 %v319, %v2305
      %v2414 = vmul.f32 %v320, %v2306
      %v2415 = vmul.f32 %v321, %v2307
      %v2416 = vmul.f32 %v322, %v2308
      %v2417 = vmul.f32 %v323, %v2309
      %v2418 = vmul.f32 %v324, %v2310
      %v2419 = vmul.f32 %v325, %v2311
      %v2420 = vadd.f32 %v1940, %v2408
      %v2421 = vadd.f32 %v1942, %v2409
      %v2422 = vadd.f32 %v2242, %v2410
      %v2423 = vadd.f32 %v1946, %v2411
      %v2424 = vadd.f32 %v1948, %v2412
      %v2425 = vadd.f32 %v2247, %v2413
      %v2426 = vadd.f32 %v1952, %v2414
      %v2427 = vadd.f32 %v1954, %v2415
      %v2428 = vadd.f32 %v2252, %v2416
      %v2429 = vadd.f32 %v1958, %v2417
      %v2430 = vadd.f32 %v1960, %v2418
      %v2431 = vadd.f32 %v2257, %v2419
      %v2432 = vxor.u32 %v2420, 2147483648
      %v2433 = vxor.u32 %v2421, 2147483648
      %v2434 = vxor.u32 %v2422, 2147483648
      %v2435 = vxor.u32 %v2423, 2147483648
      %v2436 = vxor.u32 %v2424, 2147483648
      %v2437 = vxor.u32 %v2425, 2147483648
      %v2438 = vxor.u32 %v2426, 2147483648
      %v2439 = vxor.u32 %v2427, 2147483648
      %v2440 = vxor.u32 %v2428, 2147483648
      %v2441 = vxor.u32 %v2429, 2147483648
      %v2442 = vxor.u32 %v2430, 2147483648
      %v2443 = vxor.u32 %v2431, 2147483648
      %v2444 = vmul.f32 %v2432, 1.442695
      %v2445 = vpow.pop %v2444
      %v2446 = vmul.f32 %v2433, 1.442695
      %v2447 = vpow.pop %v2446
      %v2448 = vmul.f32 %v2434, 1.442695
      %v2449 = vpow.pop %v2448
      %v2450 = vmul.f32 %v2435, 1.442695
      %v2451 = vpow.pop %v2450
      %v2452 = vmul.f32 %v2436, 1.442695
      %v2453 = vpow.pop %v2452
      %v2454 = vmul.f32 %v2437, 1.442695
      %v2455 = vpow.pop %v2454
      %v2456 = vmul.f32 %v2438, 1.442695
      %v2457 = vpow.pop %v2456
      %v2458 = vmul.f32 %v2439, 1.442695
      %v2459 = vpow.pop %v2458
      %v2460 = vmul.f32 %v2440, 1.442695
      %v2461 = vpow.pop %v2460
      %v2462 = vmul.f32 %v2441, 1.442695
      %v2463 = vpow.pop %v2462
      %v2464 = vmul.f32 %v2442, 1.442695
      %v2465 = vpow.pop %v2464
      %v2466 = vmul.f32 %v2443, 1.442695
      %v2467 = vpow.pop %v2466
      %v2468 = vadd.f32 %v2445, 1.0
      %v2469 = vadd.f32 %v2447, 1.0
      %v2470 = vadd.f32 %v2449, 1.0
      %v2471 = vadd.f32 %v2451, 1.0
      %v2472 = vadd.f32 %v2453, 1.0
      %v2473 = vadd.f32 %v2455, 1.0
      %v2474 = vadd.f32 %v2457, 1.0
      %v2475 = vadd.f32 %v2459, 1.0
      %v2476 = vadd.f32 %v2461, 1.0
      %v2477 = vadd.f32 %v2463, 1.0
      %v2478 = vadd.f32 %v2465, 1.0
      %v2479 = vadd.f32 %v2467, 1.0
      %v2480 = vrcp.pop %v2468
      %v2481 = vmul.f32 1.0, %v2480
      %v2482 = vrcp.pop %v2469
      %v2483 = vmul.f32 1.0, %v2482
      %v2484 = vrcp.pop %v2470
      %v2485 = vmul.f32 1.0, %v2484
      %v2486 = vrcp.pop %v2471
      %v2487 = vmul.f32 1.0, %v2486
      %v2488 = vrcp.pop %v2472
      %v2489 = vmul.f32 1.0, %v2488
      %v2490 = vrcp.pop %v2473
      %v2491 = vmul.f32 1.0, %v2490
      %v2492 = vrcp.pop %v2474
      %v2493 = vmul.f32 1.0, %v2492
      %v2494 = vrcp.pop %v2475
      %v2495 = vmul.f32 1.0, %v2494
      %v2496 = vrcp.pop %v2476
      %v2497 = vmul.f32 1.0, %v2496
      %v2498 = vrcp.pop %v2477
      %v2499 = vmul.f32 1.0, %v2498
      %v2500 = vrcp.pop %v2478
      %v2501 = vmul.f32 1.0, %v2500
      %v2502 = vrcp.pop %v2479
      %v2503 = vmul.f32 1.0, %v2502
      %v2504 = vmul.f32 %v2481, %v2300
      %v2505 = vmul.f32 %v2483, %v2301
      %v2506 = vmul.f32 %v2485, %v2302
      %v2507 = vmul.f32 %v2487, %v2303
      %v2508 = vmul.f32 %v2489, %v2304
      %v2509 = vmul.f32 %v2491, %v2305
      %v2510 = vmul.f32 %v2493, %v2306
      %v2511 = vmul.f32 %v2495, %v2307
      %v2512 = vmul.f32 %v2497, %v2308
      %v2513 = vmul.f32 %v2499, %v2309
      %v2514 = vmul.f32 %v2501, %v2310
      %v2515 = vmul.f32 %v2503, %v2311
      %v2516 = vtanh.pop %v1964
      %v2517 = vtanh.pop %v1966
      %v2518 = vtanh.pop %v2262
      %v2519 = vtanh.pop %v1970
      %v2520 = vtanh.pop %v1972
      %v2521 = vtanh.pop %v2267
      %v2522 = vtanh.pop %v1976
      %v2523 = vtanh.pop %v1978
      %v2524 = vtanh.pop %v2272
      %v2525 = vtanh.pop %v1982
      %v2526 = vtanh.pop %v1984
      %v2527 = vtanh.pop %v2277
      %v2528 = vmul.f32 %v2385, %v2516
      %v2529 = vmul.f32 %v2387, %v2517
      %v2530 = vmul.f32 %v2389, %v2518
      %v2531 = vmul.f32 %v2391, %v2519
      %v2532 = vmul.f32 %v2393, %v2520
      %v2533 = vmul.f32 %v2395, %v2521
      %v2534 = vmul.f32 %v2397, %v2522
      %v2535 = vmul.f32 %v2399, %v2523
      %v2536 = vmul.f32 %v2401, %v2524
      %v2537 = vmul.f32 %v2403, %v2525
      %v2538 = vmul.f32 %v2405, %v2526
      %v2539 = vmul.f32 %v2407, %v2527
      %v2540 = vadd.f32 %v2504, %v2528
      %v2541 = vadd.f32 %v2505, %v2529
      %v2542 = vadd.f32 %v2506, %v2530
      %v2543 = vadd.f32 %v2507, %v2531
      %v2544 = vadd.f32 %v2508, %v2532
      %v2545 = vadd.f32 %v2509, %v2533
      %v2546 = vadd.f32 %v2510, %v2534
      %v2547 = vadd.f32 %v2511, %v2535
      %v2548 = vadd.f32 %v2512, %v2536
      %v2549 = vadd.f32 %v2513, %v2537
      %v2550 = vadd.f32 %v2514, %v2538
      %v2551 = vadd.f32 %v2515, %v2539
      %v2552 = vmul.f32 %v327, %v2540
      %v2553 = vmul.f32 %v328, %v2541
      %v2554 = vmul.f32 %v329, %v2542
      %v2555 = vmul.f32 %v330, %v2543
      %v2556 = vmul.f32 %v331, %v2544
      %v2557 = vmul.f32 %v332, %v2545
      %v2558 = vmul.f32 %v333, %v2546
      %v2559 = vmul.f32 %v334, %v2547
      %v2560 = vmul.f32 %v335, %v2548
      %v2561 = vmul.f32 %v336, %v2549
      %v2562 = vmul.f32 %v337, %v2550
      %v2563 = vmul.f32 %v338, %v2551
      %v2564 = vadd.f32 %v1988, %v2552
      %v2565 = vadd.f32 %v1990, %v2553
      %v2566 = vadd.f32 %v2282, %v2554
      %v2567 = vadd.f32 %v1994, %v2555
      %v2568 = vadd.f32 %v1996, %v2556
      %v2569 = vadd.f32 %v2287, %v2557
      %v2570 = vadd.f32 %v2000, %v2558
      %v2571 = vadd.f32 %v2002, %v2559
      %v2572 = vadd.f32 %v2292, %v2560
      %v2573 = vadd.f32 %v2006, %v2561
      %v2574 = vadd.f32 %v2008, %v2562
      %v2575 = vadd.f32 %v2297, %v2563
      %v2576 = vxor.u32 %v2564, 2147483648
      %v2577 = vxor.u32 %v2565, 2147483648
      %v2578 = vxor.u32 %v2566, 2147483648
      %v2579 = vxor.u32 %v2567, 2147483648
      %v2580 = vxor.u32 %v2568, 2147483648
      %v2581 = vxor.u32 %v2569, 2147483648
      %v2582 = vxor.u32 %v2570, 2147483648
      %v2583 = vxor.u32 %v2571, 2147483648
      %v2584 = vxor.u32 %v2572, 2147483648
      %v2585 = vxor.u32 %v2573, 2147483648
      %v2586 = vxor.u32 %v2574, 2147483648
      %v2587 = vxor.u32 %v2575, 2147483648
      %v2588 = vmul.f32 %v2576, 1.442695
      %v2589 = vpow.pop %v2588
      %v2590 = vmul.f32 %v2577, 1.442695
      %v2591 = vpow.pop %v2590
      %v2592 = vmul.f32 %v2578, 1.442695
      %v2593 = vpow.pop %v2592
      %v2594 = vmul.f32 %v2579, 1.442695
      %v2595 = vpow.pop %v2594
      %v2596 = vmul.f32 %v2580, 1.442695
      %v2597 = vpow.pop %v2596
      %v2598 = vmul.f32 %v2581, 1.442695
      %v2599 = vpow.pop %v2598
      %v2600 = vmul.f32 %v2582, 1.442695
      %v2601 = vpow.pop %v2600
      %v2602 = vmul.f32 %v2583, 1.442695
      %v2603 = vpow.pop %v2602
      %v2604 = vmul.f32 %v2584, 1.442695
      %v2605 = vpow.pop %v2604
      %v2606 = vmul.f32 %v2585, 1.442695
      %v2607 = vpow.pop %v2606
      %v2608 = vmul.f32 %v2586, 1.442695
      %v2609 = vpow.pop %v2608
      %v2610 = vmul.f32 %v2587, 1.442695
      %v2611 = vpow.pop %v2610
      %v2612 = vadd.f32 %v2589, 1.0
      %v2613 = vadd.f32 %v2591, 1.0
      %v2614 = vadd.f32 %v2593, 1.0
      %v2615 = vadd.f32 %v2595, 1.0
      %v2616 = vadd.f32 %v2597, 1.0
      %v2617 = vadd.f32 %v2599, 1.0
      %v2618 = vadd.f32 %v2601, 1.0
      %v2619 = vadd.f32 %v2603, 1.0
      %v2620 = vadd.f32 %v2605, 1.0
      %v2621 = vadd.f32 %v2607, 1.0
      %v2622 = vadd.f32 %v2609, 1.0
      %v2623 = vadd.f32 %v2611, 1.0
      %v2624 = vrcp.pop %v2612
      %v2625 = vmul.f32 1.0, %v2624
      %v2626 = vrcp.pop %v2613
      %v2627 = vmul.f32 1.0, %v2626
      %v2628 = vrcp.pop %v2614
      %v2629 = vmul.f32 1.0, %v2628
      %v2630 = vrcp.pop %v2615
      %v2631 = vmul.f32 1.0, %v2630
      %v2632 = vrcp.pop %v2616
      %v2633 = vmul.f32 1.0, %v2632
      %v2634 = vrcp.pop %v2617
      %v2635 = vmul.f32 1.0, %v2634
      %v2636 = vrcp.pop %v2618
      %v2637 = vmul.f32 1.0, %v2636
      %v2638 = vrcp.pop %v2619
      %v2639 = vmul.f32 1.0, %v2638
      %v2640 = vrcp.pop %v2620
      %v2641 = vmul.f32 1.0, %v2640
      %v2642 = vrcp.pop %v2621
      %v2643 = vmul.f32 1.0, %v2642
      %v2644 = vrcp.pop %v2622
      %v2645 = vmul.f32 1.0, %v2644
      %v2646 = vrcp.pop %v2623
      %v2647 = vmul.f32 1.0, %v2646
      %v2648 = vtanh.pop %v2540
      %v2649 = vtanh.pop %v2541
      %v2650 = vtanh.pop %v2542
      %v2651 = vtanh.pop %v2543
      %v2652 = vtanh.pop %v2544
      %v2653 = vtanh.pop %v2545
      %v2654 = vtanh.pop %v2546
      %v2655 = vtanh.pop %v2547
      %v2656 = vtanh.pop %v2548
      %v2657 = vtanh.pop %v2549
      %v2658 = vtanh.pop %v2550
      %v2659 = vtanh.pop %v2551
      %v2660 = vmul.f32 %v2625, %v2648
      %v2661 = vmul.f32 %v2627, %v2649
      %v2662 = vmul.f32 %v2629, %v2650
      %v2663 = vmul.f32 %v2631, %v2651
      %v2664 = vmul.f32 %v2633, %v2652
      %v2665 = vmul.f32 %v2635, %v2653
      %v2666 = vmul.f32 %v2637, %v2654
      %v2667 = vmul.f32 %v2639, %v2655
      %v2668 = vmul.f32 %v2641, %v2656
      %v2669 = vmul.f32 %v2643, %v2657
      %v2670 = vmul.f32 %v2645, %v2658
      %v2671 = vmul.f32 %v2647, %v2659
      %2672 = vst [vmem:[%s279] sm:$0xff] %v2660
      %2673 = vst [vmem:[%s279 + $0x8] sm:$0xff] %v2661
      %2674 = vst [vmem:[%s279 + $0x10] sm:$0xff] %v2662
      %2675 = vst [vmem:[%s279 + $0x18] sm:$0xff] %v2663
      %2676 = vst [vmem:[%s279 + $0x20] sm:$0xff] %v2664
      %2677 = vst [vmem:[%s279 + $0x28] sm:$0xff] %v2665
      %2678 = vst [vmem:[%s279 + $0x30] sm:$0xff] %v2666
      %2679 = vst [vmem:[%s279 + $0x38] sm:$0xff] %v2667
      %2680 = vst [vmem:[%s279 + $0x40] sm:$0xff] %v2668
      %2681 = vst [vmem:[%s279 + $0x48] sm:$0xff] %v2669
      %2682 = vst [vmem:[%s279 + $0x50] sm:$0xff] %v2670
      %2683 = vst [vmem:[%s279 + $0x58] sm:$0xff] %v2671
      %2684 = vst [vmem:[%s284] sm:$0xff] %v2540
      %2685 = vst [vmem:[%s284 + $0x8] sm:$0xff] %v2541
      %2686 = vst [vmem:[%s284 + $0x10] sm:$0xff] %v2542
      %2687 = vst [vmem:[%s284 + $0x18] sm:$0xff] %v2543
      %2688 = vst [vmem:[%s284 + $0x20] sm:$0xff] %v2544
      %2689 = vst [vmem:[%s284 + $0x28] sm:$0xff] %v2545
      %2690 = vst [vmem:[%s284 + $0x30] sm:$0xff] %v2546
      %2691 = vst [vmem:[%s284 + $0x38] sm:$0xff] %v2547
      %2692 = vst [vmem:[%s284 + $0x40] sm:$0xff] %v2548
      %2693 = vst [vmem:[%s284 + $0x48] sm:$0xff] %v2549
      %2694 = vst [vmem:[%s284 + $0x50] sm:$0xff] %v2550
      %2695 = vst [vmem:[%s284 + $0x58] sm:$0xff] %v2551
      %p2696 = scmp.lt.s32.totalorder %s18, 1
      %s2697 = scalar_select %p2696, %s18, 1
      %s2698 = smul.addr %s2697, 12
      %s2699 = smul.addr %s2698, 8
      %s2700 = scalar_lea.vmem %s5, %s2699
      %p2701 = scmp.lt.s32.totalorder %s18, 1
      %s2702 = scalar_select %p2701, %s18, 1
      %s2703 = smul.addr %s2702, 12
      %s2704 = smul.addr %s2703, 8
      %s2705 = scalar_lea.vmem %s6, %s2704
      // Predicated region
      $region41: #{convlstm_cell_forward.1} parent=39 // pred_check
        %p2706 = pneg %p151
      $region42: #{convlstm_cell_forward.1} parent=39 // pred_check_branch
        %2708 = sbr.rel (%p2706) target = $region44
      $region43: #{convlstm_cell_forward.1} parent=39 // pred_region
        _
      $region44: #{convlstm_cell_forward.1} parent=39 // pred_fallthru
        _
      // Predicated region
      $region45: #{convlstm_cell_forward.1} parent=39 // pred_check
        %p2709 = pneg %p177
      $region46: #{convlstm_cell_forward.1} parent=39 // pred_check_branch
        %2711 = sbr.rel (%p2709) target = $region48
      $region47: #{convlstm_cell_forward.1} parent=39 // pred_region
        _
      $region48: #{convlstm_cell_forward.1} parent=39 // pred_fallthru
        _
    $region40: #{convlstm_cell_forward.1} parent=5 // pred_fallthru
      _
    %p2712 = scmp.le.s32.totalorder 2, %s13
    // Predicated region
    $region49: #{convlstm_cell_forward.1} parent=5 // pred_check
      %p2713 = pneg %p2712
    $region50: #{convlstm_cell_forward.1} parent=5 // pred_check_branch
      %2715 = sbr.rel (%p2713) target = $region52
    $region51: #{convlstm_cell_forward.1} parent=5 // pred_region
      %s2716 = ssub.s32 %s13, 2
      // Predicated region
      $region53: #{convlstm_cell_forward.1} parent=51 // pred_check
        %p2717 = pneg %p157
      $region54: #{convlstm_cell_forward.1} parent=51 // pred_check_branch
        %2719 = sbr.rel (%p2717) target = $region56
      $region55: #{convlstm_cell_forward.1} parent=51 // pred_region
        %p2720 = scmp.lt.s32.totalorder %s19, 1
        %s2721 = scalar_select %p2720, %s19, 1
        %s2722 = smul.addr %s2721, 12
        %s2723 = smul.addr %s2722, 8
        %s2724 = scalar_lea.vmem %s5, %s2723
      $region56: #{convlstm_cell_forward.1} parent=51 // pred_fallthru
        _
      // Predicated region
      $region57: #{convlstm_cell_forward.1} parent=51 // pred_check
        %p2725 = pneg %p183
      $region58: #{convlstm_cell_forward.1} parent=51 // pred_check_branch
        %2727 = sbr.rel (%p2725) target = $region60
      $region59: #{convlstm_cell_forward.1} parent=51 // pred_region
        %p2728 = scmp.lt.s32.totalorder %s19, 1
        %s2729 = scalar_select %p2728, %s19, 1
        %s2730 = smul.addr %s2729, 12
        %s2731 = smul.addr %s2730, 8
        %s2732 = scalar_lea.vmem %s6, %s2731
      $region60: #{convlstm_cell_forward.1} parent=51 // pred_fallthru
        _
    $region52: #{convlstm_cell_forward.1} parent=5 // pred_fallthru
      _
  $region6: #{convlstm_cell_forward.1} parent=0 // loop_footer
    %s17 = sadd.s32 1, %s13
  $region7: #{convlstm_cell_forward.1} parent=0 // loop_footer_branch
    %12 = sbr.rel target = $region3
  $region8: #{convlstm_cell_forward.1} parent=0 // loop_exit
    _

</llo_original>
